<compile_context>
chip_gen: v7x
topology: tpu7x:2x2x1
jax: 0.10.0
libtpu: 0.0.40
codegen_flags: <defaults>
</compile_context>

<pallas_src>
import functools

import numpy as np

import jax
import jax.numpy as jnp
from jax import lax
from jax.experimental import pallas as pl
from jax.experimental.pallas import tpu as pltpu

BN_EPS = 1e-5


def _double_conv_kernel(x_ref, wb1_ref, wb2_ref, red_ref,
                        g1_ref, be1_ref, a1_ref,
                        g2_ref, be2_ref, a2_ref,
                        o_ref, pad1_ref, pad2_ref,
                        *, n, h, w, c, dil):
    """Fused (dilated 3x3 conv -> BN(batch stats) -> PReLU) x 2.

    x_ref   : (N, H, W*Cin)     input rows (NHWC flattened along W,C)
    wb*_ref : (3, W*Cin_s, W*C) banded weights, one matrix per ky tap
    red_ref : (W*C, W*C)        per-channel reduce/broadcast matrix * 1/(N*H*W)
    g/be/a  : (1, W*C)          gamma / beta / prelu-alpha tiled over W
    o_ref   : (N*H, W*C)        lane-dense output slab
    pad*    : (N, H+2d, W*C_s)  VMEM scratch, zero-padded along H only
    """
    nh = n * h
    wc = w * c
    red = red_ref[...]

    def conv_bn_prelu(pad_ref, wb_ref, gamma, beta, alpha):
        k = pad_ref.shape[-1]

        def tap(ky):  # ky-shifted row slab, read as a static ref window
            return pad_ref[:, ky * dil:ky * dil + h, :].reshape(nh, k)

        # dilated 3x3 conv == 3 lane-dense MXU matmuls (kx folded into the band)
        acc = jnp.dot(tap(0), wb_ref[0], preferred_element_type=jnp.float32)
        acc = acc + jnp.dot(tap(1), wb_ref[1], preferred_element_type=jnp.float32)
        acc = acc + jnp.dot(tap(2), wb_ref[2], preferred_element_type=jnp.float32)

        # BatchNorm2d (training mode, biased batch stats per channel over N*H*W).
        # acc @ red sums over the W-interleaved channel groups on the MXU and
        # applies 1/(N*H*W); the row-sum finishes the reduction and broadcasts.
        mean = jnp.sum(jnp.dot(acc, red, preferred_element_type=jnp.float32),
                       axis=0, keepdims=True)                              # (1, W*C)
        centered = acc - mean
        var = jnp.sum(jnp.dot(centered * centered, red,
                              preferred_element_type=jnp.float32),
                      axis=0, keepdims=True)                               # (1, W*C)
        y = centered * (gamma * lax.rsqrt(var + BN_EPS)) + beta            # folded scale/shift
        return jnp.where(y > 0, y, alpha * y)                              # PReLU

    # ---- stage 1: zero-pad the input rows in VMEM (no HBM padded copy) ----
    pad1_ref[...] = jnp.zeros_like(pad1_ref)
    pad1_ref[:, dil:dil + h, :] = x_ref[...].astype(jnp.float32)
    y1 = conv_bn_prelu(pad1_ref, wb1_ref, g1_ref[...], be1_ref[...], a1_ref[...])

    # ---- stage 2: intermediate stays in VMEM (fused; no HBM round trip) ----
    pad2_ref[...] = jnp.zeros_like(pad2_ref)
    pad2_ref[:, dil:dil + h, :] = y1.reshape(n, h, wc)
    y2 = conv_bn_prelu(pad2_ref, wb2_ref, g2_ref[...], be2_ref[...], a2_ref[...])

    # lane-dense store: (N*H, W*C) -> W*C = 128 lanes at the test shape
    o_ref[...] = y2.astype(o_ref.dtype)


def _band_weights(w_hwio, width, dil):
    """(3,3,Cin,Cout) HWIO -> (3, W*Cin, W*Cout): per-ky block-banded matrices.

    band[ky][wi*Cin+ci, wo*Cout+co] = w[ky,kx,ci,co]  where wi = wo + (kx-1)*dil
    (entries with wi outside [0, W) are omitted == zero 'same' padding in W)."""
    kh, kw, cin, cout = w_hwio.shape
    sel = np.zeros((kw, width, width), np.float32)
    for kx in range(kw):
        for wo in range(width):
            wi = wo + (kx - kw // 2) * dil
            if 0 <= wi < width:
                sel[kx, wi, wo] = 1.0
    band = jnp.einsum('ykio,kab->yaibo', w_hwio, jnp.asarray(sel))
    return band.reshape(kh, width * cin, width * cout)


def _channel_reduce_matrix(width, channels, count):
    """(W*C, W*C) matrix R with R[w*C+c, w'*C+c'] = 1/count iff c == c'."""
    r = np.tile(np.eye(channels, dtype=np.float32), (width, width)) / float(count)
    return jnp.asarray(r)


def double_conv(x_nchw, params, dilation):
    """params = [(w1,b1,g1,beta1,a1), (w2,b2,g2,beta2,a2)] with conv weights in HWIO.

    Conv biases are accepted but unused: training-mode BatchNorm subtracts the
    batch mean, which cancels a per-channel bias exactly."""
    n, cin, h, wd = x_nchw.shape
    (w1, _b1, g1, be1, a1), (w2, _b2, g2, be2, a2) = params
    c = w1.shape[-1]
    wc = wd * c
    hp = h + 2 * dilation

    # NCHW -> (N, H, W*Cin) row slabs (contiguous reshape of NHWC)
    x_rows = jnp.transpose(x_nchw, (0, 2, 3, 1)).reshape(n, h, wd * cin)

    wb1 = _band_weights(w1, wd, dilation)            # (3, W*Cin, W*C)
    wb2 = _band_weights(w2, wd, dilation)            # (3, W*C,   W*C)
    red = _channel_reduce_matrix(wd, c, n * h * wd)  # (W*C, W*C)
    tile_cols = lambda p: jnp.tile(p, wd).reshape(1, wc)

    kernel = functools.partial(_double_conv_kernel,
                               n=n, h=h, w=wd, c=c, dil=dilation)
    vmem = pl.BlockSpec(memory_space=pltpu.MemorySpace.VMEM)
    out2d = pl.pallas_call(
        kernel,
        out_shape=jax.ShapeDtypeStruct((n * h, wc), x_nchw.dtype),
        in_specs=[vmem] * 10,
        out_specs=vmem,
        scratch_shapes=[
            pltpu.VMEM((n, hp, wd * cin), jnp.float32),   # H-padded input
            pltpu.VMEM((n, hp, wc), jnp.float32),         # H-padded stage-1 activation
        ],
        compiler_params=pltpu.CompilerParams(vmem_limit_bytes=32 * 1024 * 1024),
    )(x_rows, wb1, wb2, red,
      tile_cols(g1), tile_cols(be1), tile_cols(a1),
      tile_cols(g2), tile_cols(be2), tile_cols(a2))

    return jnp.transpose(out2d.reshape(n, h, wd, c), (0, 3, 1, 2))   # -> NCHW


def _init_params(key, in_channels, out_channels):
    """Deterministic, PyTorch-default-like initialization."""
    params = []
    cin = in_channels
    for _ in range(2):
        k_w, k_b, key = jax.random.split(key, 3)
        fan_in = cin * 3 * 3
        bound = 1.0 / jnp.sqrt(float(fan_in))
        w = jax.random.uniform(k_w, (3, 3, cin, out_channels), jnp.float32,
                               -bound, bound)          # HWIO
        b = jax.random.uniform(k_b, (out_channels,), jnp.float32, -bound, bound)
        gamma = jnp.ones((out_channels,), jnp.float32)
        beta = jnp.zeros((out_channels,), jnp.float32)
        alpha = jnp.full((out_channels,), 0.25, jnp.float32)   # PReLU default
        params.append((w, b, gamma, beta, alpha))
        cin = out_channels
    return params


def _reference(x_nchw, params, dil):
    """Pure-JAX reference of the same forward pass (for correctness check)."""
    x = x_nchw
    for (w, b, g, be, a) in params:
        xn = jnp.transpose(x, (0, 2, 3, 1))
        y = lax.conv_general_dilated(
            xn, w, window_strides=(1, 1),
            padding=((dil, dil), (dil, dil)), rhs_dilation=(dil, dil),
            dimension_numbers=('NHWC', 'HWIO', 'NHWC')) + b
        mean = jnp.mean(y, axis=(0, 1, 2), keepdims=True)
        var = jnp.mean((y - mean) ** 2, axis=(0, 1, 2), keepdims=True)
        y = (y - mean) / jnp.sqrt(var + BN_EPS) * g + be
        y = jnp.where(y > 0, y, a * y)
        x = jnp.transpose(y, (0, 3, 1, 2))
    return x


if __name__ == "__main__":
    in_channels, out_channels, dilation = 4, 8, 2
    key = jax.random.PRNGKey(0)
    k_x, k_p = jax.random.split(key)

    x = jax.random.normal(k_x, (2, in_channels, 16, 16), jnp.float32)  # NCHW
    params = _init_params(k_p, in_channels, out_channels)

    out = jax.block_until_ready(double_conv(x, params, dilation))
    assert out.shape == (2, out_channels, 16, 16), out.shape

    ref = jax.block_until_ready(_reference(x, params, dilation))
    assert jnp.allclose(out, ref, atol=1e-3, rtol=1e-3), \
        float(jnp.max(jnp.abs(out - ref)))

    print("KERNEL_OK")
</pallas_src>

<mosaic_0001>
module attributes {stable_mosaic.version = 11 : i64} {
  func.func @_double_conv_kernel(%arg0: memref<2x16x64xf32, #tpu.memory_space<vmem>>, %arg1: memref<3x64x128xf32, #tpu.memory_space<vmem>>, %arg2: memref<3x128x128xf32, #tpu.memory_space<vmem>>, %arg3: memref<128x128xf32, #tpu.memory_space<vmem>>, %arg4: memref<1x128xf32, #tpu.memory_space<vmem>>, %arg5: memref<1x128xf32, #tpu.memory_space<vmem>>, %arg6: memref<1x128xf32, #tpu.memory_space<vmem>>, %arg7: memref<1x128xf32, #tpu.memory_space<vmem>>, %arg8: memref<1x128xf32, #tpu.memory_space<vmem>>, %arg9: memref<1x128xf32, #tpu.memory_space<vmem>>, %arg10: memref<32x128xf32, #tpu.memory_space<vmem>>, %arg11: memref<2x20x64xf32, #tpu.memory_space<vmem>>, %arg12: memref<2x20x128xf32, #tpu.memory_space<vmem>>) attributes {dimension_semantics = [], scalar_prefetch = 0 : i64, scratch_operands = 2 : i64, tpu.core_type = #tpu.core_type<tc>} {
    %c0 = arith.constant 0 : index
    %c0_0 = arith.constant 0 : index
    %0 = vector.load %arg3[%c0, %c0_0] : memref<128x128xf32, #tpu.memory_space<vmem>>, vector<128x128xf32>
    %cst = arith.constant 0.000000e+00 : f32
    %1 = vector.broadcast %cst : f32 to vector<2x20x64xf32>
    %c0_1 = arith.constant 0 : index
    %c0_2 = arith.constant 0 : index
    %c0_3 = arith.constant 0 : index
    %2 = vector.load %arg11[%c0_1, %c0_2, %c0_3] : memref<2x20x64xf32, #tpu.memory_space<vmem>>, vector<2x20x64xf32>
    tpu.vector_store %arg11[%c0_1, %c0_2, %c0_3], %1 {strides = array<i32>} : memref<2x20x64xf32, #tpu.memory_space<vmem>>, vector<2x20x64xf32>,
    %c0_4 = arith.constant 0 : index
    %c0_5 = arith.constant 0 : index
    %c0_6 = arith.constant 0 : index
    %3 = vector.load %arg0[%c0_4, %c0_5, %c0_6] : memref<2x16x64xf32, #tpu.memory_space<vmem>>, vector<2x16x64xf32>
    %c0_7 = arith.constant 0 : index
    %c2 = arith.constant 2 : index
    %c0_8 = arith.constant 0 : index
    %4 = vector.load %arg11[%c0_7, %c2, %c0_8] : memref<2x20x64xf32, #tpu.memory_space<vmem>>, vector<2x16x64xf32>
    tpu.vector_store %arg11[%c0_7, %c2, %c0_8], %3 {strides = array<i32>} : memref<2x20x64xf32, #tpu.memory_space<vmem>>, vector<2x16x64xf32>,
    %c0_9 = arith.constant 0 : index
    %c0_10 = arith.constant 0 : index
    %5 = vector.load %arg4[%c0_9, %c0_10] : memref<1x128xf32, #tpu.memory_space<vmem>>, vector<1x128xf32>
    %c0_11 = arith.constant 0 : index
    %c0_12 = arith.constant 0 : index
    %6 = vector.load %arg5[%c0_11, %c0_12] : memref<1x128xf32, #tpu.memory_space<vmem>>, vector<1x128xf32>
    %c0_13 = arith.constant 0 : index
    %c0_14 = arith.constant 0 : index
    %7 = vector.load %arg6[%c0_13, %c0_14] : memref<1x128xf32, #tpu.memory_space<vmem>>, vector<1x128xf32>
    %c0_15 = arith.constant 0 : index
    %c0_16 = arith.constant 0 : index
    %c0_17 = arith.constant 0 : index
    %8 = vector.load %arg11[%c0_15, %c0_16, %c0_17] : memref<2x20x64xf32, #tpu.memory_space<vmem>>, vector<2x16x64xf32>
    %9 = vector.shape_cast %8 : vector<2x16x64xf32> to vector<32x64xf32>
    %c0_18 = arith.constant 0 : index
    %c0_19 = arith.constant 0 : index
    %c0_20 = arith.constant 0 : index
    %10 = vector.load %arg1[%c0_18, %c0_19, %c0_20] : memref<3x64x128xf32, #tpu.memory_space<vmem>>, vector<1x64x128xf32>
    %11 = vector.shape_cast %10 : vector<1x64x128xf32> to vector<64x128xf32>
    %cst_21 = arith.constant dense<0.000000e+00> : vector<32x128xf32>
    %12 = tpu.matmul %9, %11, %cst_21 {dimension_numbers = #tpu.dot_dimension_numbers<[1], [0], [0], [1], [0, 0, 1, 1], [], []>} : vector<32x64xf32>, vector<64x128xf32>, vector<32x128xf32> -> vector<32x128xf32>
    %c0_22 = arith.constant 0 : index
    %c2_23 = arith.constant 2 : index
    %c0_24 = arith.constant 0 : index
    %13 = vector.load %arg11[%c0_22, %c2_23, %c0_24] : memref<2x20x64xf32, #tpu.memory_space<vmem>>, vector<2x16x64xf32>
    %14 = vector.shape_cast %13 : vector<2x16x64xf32> to vector<32x64xf32>
    %c1 = arith.constant 1 : index
    %c0_25 = arith.constant 0 : index
    %c0_26 = arith.constant 0 : index
    %15 = vector.load %arg1[%c1, %c0_25, %c0_26] : memref<3x64x128xf32, #tpu.memory_space<vmem>>, vector<1x64x128xf32>
    %16 = vector.shape_cast %15 : vector<1x64x128xf32> to vector<64x128xf32>
    %cst_27 = arith.constant dense<0.000000e+00> : vector<32x128xf32>
    %17 = tpu.matmul %14, %16, %cst_27 {dimension_numbers = #tpu.dot_dimension_numbers<[1], [0], [0], [1], [0, 0, 1, 1], [], []>} : vector<32x64xf32>, vector<64x128xf32>, vector<32x128xf32> -> vector<32x128xf32>
    %18 = arith.addf %12, %17 : vector<32x128xf32>
    %c0_28 = arith.constant 0 : index
    %c4 = arith.constant 4 : index
    %c0_29 = arith.constant 0 : index
    %19 = vector.load %arg11[%c0_28, %c4, %c0_29] : memref<2x20x64xf32, #tpu.memory_space<vmem>>, vector<2x16x64xf32>
    %20 = vector.shape_cast %19 : vector<2x16x64xf32> to vector<32x64xf32>
    %c2_30 = arith.constant 2 : index
    %c0_31 = arith.constant 0 : index
    %c0_32 = arith.constant 0 : index
    %21 = vector.load %arg1[%c2_30, %c0_31, %c0_32] : memref<3x64x128xf32, #tpu.memory_space<vmem>>, vector<1x64x128xf32>
    %22 = vector.shape_cast %21 : vector<1x64x128xf32> to vector<64x128xf32>
    %cst_33 = arith.constant dense<0.000000e+00> : vector<32x128xf32>
    %23 = tpu.matmul %20, %22, %cst_33 {dimension_numbers = #tpu.dot_dimension_numbers<[1], [0], [0], [1], [0, 0, 1, 1], [], []>} : vector<32x64xf32>, vector<64x128xf32>, vector<32x128xf32> -> vector<32x128xf32>
    %24 = arith.addf %18, %23 : vector<32x128xf32>
    %cst_34 = arith.constant dense<0.000000e+00> : vector<32x128xf32>
    %25 = tpu.matmul %24, %0, %cst_34 {dimension_numbers = #tpu.dot_dimension_numbers<[1], [0], [0], [1], [0, 0, 1, 1], [], []>} : vector<32x128xf32>, vector<128x128xf32>, vector<32x128xf32> -> vector<32x128xf32>
    %cst_35 = arith.constant dense<0.000000e+00> : vector<128xf32>
    %26 = vector.multi_reduction <add>, %25, %cst_35 [0] : vector<32x128xf32> to vector<128xf32>
    %27 = vector.shape_cast %26 : vector<128xf32> to vector<1x128xf32>
    %28 = vector.broadcast %27 : vector<1x128xf32> to vector<32x128xf32>
    %29 = arith.subf %24, %28 : vector<32x128xf32>
    %30 = arith.mulf %29, %29 : vector<32x128xf32>
    %cst_36 = arith.constant dense<0.000000e+00> : vector<32x128xf32>
    %31 = tpu.matmul %30, %0, %cst_36 {dimension_numbers = #tpu.dot_dimension_numbers<[1], [0], [0], [1], [0, 0, 1, 1], [], []>} : vector<32x128xf32>, vector<128x128xf32>, vector<32x128xf32> -> vector<32x128xf32>
    %cst_37 = arith.constant dense<0.000000e+00> : vector<128xf32>
    %32 = vector.multi_reduction <add>, %31, %cst_37 [0] : vector<32x128xf32> to vector<128xf32>
    %33 = vector.shape_cast %32 : vector<128xf32> to vector<1x128xf32>
    %cst_38 = arith.constant 9.99999974E-6 : f32
    %34 = vector.broadcast %cst_38 : f32 to vector<1x128xf32>
    %35 = arith.addf %33, %34 : vector<1x128xf32>
    %36 = math.rsqrt %35 : vector<1x128xf32>
    %37 = arith.mulf %5, %36 : vector<1x128xf32>
    %38 = vector.broadcast %37 : vector<1x128xf32> to vector<32x128xf32>
    %39 = arith.mulf %29, %38 : vector<32x128xf32>
    %40 = vector.broadcast %6 : vector<1x128xf32> to vector<32x128xf32>
    %41 = arith.addf %39, %40 : vector<32x128xf32>
    %cst_39 = arith.constant 0.000000e+00 : f32
    %42 = vector.broadcast %cst_39 : f32 to vector<32x128xf32>
    %43 = arith.cmpf ogt, %41, %42 : vector<32x128xf32>
    %44 = vector.broadcast %7 : vector<1x128xf32> to vector<32x128xf32>
    %45 = arith.mulf %44, %41 : vector<32x128xf32>
    %46 = arith.select %43, %41, %45 : vector<32x128xi1>, vector<32x128xf32>
    %cst_40 = arith.constant 0.000000e+00 : f32
    %47 = vector.broadcast %cst_40 : f32 to vector<2x20x128xf32>
    %c0_41 = arith.constant 0 : index
    %c0_42 = arith.constant 0 : index
    %c0_43 = arith.constant 0 : index
    %48 = vector.load %arg12[%c0_41, %c0_42, %c0_43] : memref<2x20x128xf32, #tpu.memory_space<vmem>>, vector<2x20x128xf32>
    tpu.vector_store %arg12[%c0_41, %c0_42, %c0_43], %47 {strides = array<i32>} : memref<2x20x128xf32, #tpu.memory_space<vmem>>, vector<2x20x128xf32>,
    %49 = vector.shape_cast %46 : vector<32x128xf32> to vector<2x16x128xf32>
    %c0_44 = arith.constant 0 : index
    %c2_45 = arith.constant 2 : index
    %c0_46 = arith.constant 0 : index
    %50 = vector.load %arg12[%c0_44, %c2_45, %c0_46] : memref<2x20x128xf32, #tpu.memory_space<vmem>>, vector<2x16x128xf32>
    tpu.vector_store %arg12[%c0_44, %c2_45, %c0_46], %49 {strides = array<i32>} : memref<2x20x128xf32, #tpu.memory_space<vmem>>, vector<2x16x128xf32>,
    %c0_47 = arith.constant 0 : index
    %c0_48 = arith.constant 0 : index
    %51 = vector.load %arg7[%c0_47, %c0_48] : memref<1x128xf32, #tpu.memory_space<vmem>>, vector<1x128xf32>
    %c0_49 = arith.constant 0 : index
    %c0_50 = arith.constant 0 : index
    %52 = vector.load %arg8[%c0_49, %c0_50] : memref<1x128xf32, #tpu.memory_space<vmem>>, vector<1x128xf32>
    %c0_51 = arith.constant 0 : index
    %c0_52 = arith.constant 0 : index
    %53 = vector.load %arg9[%c0_51, %c0_52] : memref<1x128xf32, #tpu.memory_space<vmem>>, vector<1x128xf32>
    %c0_53 = arith.constant 0 : index
    %c0_54 = arith.constant 0 : index
    %c0_55 = arith.constant 0 : index
    %54 = vector.load %arg12[%c0_53, %c0_54, %c0_55] : memref<2x20x128xf32, #tpu.memory_space<vmem>>, vector<2x16x128xf32>
    %55 = vector.shape_cast %54 : vector<2x16x128xf32> to vector<32x128xf32>
    %c0_56 = arith.constant 0 : index
    %c0_57 = arith.constant 0 : index
    %c0_58 = arith.constant 0 : index
    %56 = vector.load %arg2[%c0_56, %c0_57, %c0_58] : memref<3x128x128xf32, #tpu.memory_space<vmem>>, vector<1x128x128xf32>
    %57 = vector.shape_cast %56 : vector<1x128x128xf32> to vector<128x128xf32>
    %cst_59 = arith.constant dense<0.000000e+00> : vector<32x128xf32>
    %58 = tpu.matmul %55, %57, %cst_59 {dimension_numbers = #tpu.dot_dimension_numbers<[1], [0], [0], [1], [0, 0, 1, 1], [], []>} : vector<32x128xf32>, vector<128x128xf32>, vector<32x128xf32> -> vector<32x128xf32>
    %c0_60 = arith.constant 0 : index
    %c2_61 = arith.constant 2 : index
    %c0_62 = arith.constant 0 : index
    %59 = vector.load %arg12[%c0_60, %c2_61, %c0_62] : memref<2x20x128xf32, #tpu.memory_space<vmem>>, vector<2x16x128xf32>
    %60 = vector.shape_cast %59 : vector<2x16x128xf32> to vector<32x128xf32>
    %c1_63 = arith.constant 1 : index
    %c0_64 = arith.constant 0 : index
    %c0_65 = arith.constant 0 : index
    %61 = vector.load %arg2[%c1_63, %c0_64, %c0_65] : memref<3x128x128xf32, #tpu.memory_space<vmem>>, vector<1x128x128xf32>
    %62 = vector.shape_cast %61 : vector<1x128x128xf32> to vector<128x128xf32>
    %cst_66 = arith.constant dense<0.000000e+00> : vector<32x128xf32>
    %63 = tpu.matmul %60, %62, %cst_66 {dimension_numbers = #tpu.dot_dimension_numbers<[1], [0], [0], [1], [0, 0, 1, 1], [], []>} : vector<32x128xf32>, vector<128x128xf32>, vector<32x128xf32> -> vector<32x128xf32>
    %64 = arith.addf %58, %63 : vector<32x128xf32>
    %c0_67 = arith.constant 0 : index
    %c4_68 = arith.constant 4 : index
    %c0_69 = arith.constant 0 : index
    %65 = vector.load %arg12[%c0_67, %c4_68, %c0_69] : memref<2x20x128xf32, #tpu.memory_space<vmem>>, vector<2x16x128xf32>
    %66 = vector.shape_cast %65 : vector<2x16x128xf32> to vector<32x128xf32>
    %c2_70 = arith.constant 2 : index
    %c0_71 = arith.constant 0 : index
    %c0_72 = arith.constant 0 : index
    %67 = vector.load %arg2[%c2_70, %c0_71, %c0_72] : memref<3x128x128xf32, #tpu.memory_space<vmem>>, vector<1x128x128xf32>
    %68 = vector.shape_cast %67 : vector<1x128x128xf32> to vector<128x128xf32>
    %cst_73 = arith.constant dense<0.000000e+00> : vector<32x128xf32>
    %69 = tpu.matmul %66, %68, %cst_73 {dimension_numbers = #tpu.dot_dimension_numbers<[1], [0], [0], [1], [0, 0, 1, 1], [], []>} : vector<32x128xf32>, vector<128x128xf32>, vector<32x128xf32> -> vector<32x128xf32>
    %70 = arith.addf %64, %69 : vector<32x128xf32>
    %cst_74 = arith.constant dense<0.000000e+00> : vector<32x128xf32>
    %71 = tpu.matmul %70, %0, %cst_74 {dimension_numbers = #tpu.dot_dimension_numbers<[1], [0], [0], [1], [0, 0, 1, 1], [], []>} : vector<32x128xf32>, vector<128x128xf32>, vector<32x128xf32> -> vector<32x128xf32>
    %cst_75 = arith.constant dense<0.000000e+00> : vector<128xf32>
    %72 = vector.multi_reduction <add>, %71, %cst_75 [0] : vector<32x128xf32> to vector<128xf32>
    %73 = vector.shape_cast %72 : vector<128xf32> to vector<1x128xf32>
    %74 = vector.broadcast %73 : vector<1x128xf32> to vector<32x128xf32>
    %75 = arith.subf %70, %74 : vector<32x128xf32>
    %76 = arith.mulf %75, %75 : vector<32x128xf32>
    %cst_76 = arith.constant dense<0.000000e+00> : vector<32x128xf32>
    %77 = tpu.matmul %76, %0, %cst_76 {dimension_numbers = #tpu.dot_dimension_numbers<[1], [0], [0], [1], [0, 0, 1, 1], [], []>} : vector<32x128xf32>, vector<128x128xf32>, vector<32x128xf32> -> vector<32x128xf32>
    %cst_77 = arith.constant dense<0.000000e+00> : vector<128xf32>
    %78 = vector.multi_reduction <add>, %77, %cst_77 [0] : vector<32x128xf32> to vector<128xf32>
    %79 = vector.shape_cast %78 : vector<128xf32> to vector<1x128xf32>
    %cst_78 = arith.constant 9.99999974E-6 : f32
    %80 = vector.broadcast %cst_78 : f32 to vector<1x128xf32>
    %81 = arith.addf %79, %80 : vector<1x128xf32>
    %82 = math.rsqrt %81 : vector<1x128xf32>
    %83 = arith.mulf %51, %82 : vector<1x128xf32>
    %84 = vector.broadcast %83 : vector<1x128xf32> to vector<32x128xf32>
    %85 = arith.mulf %75, %84 : vector<32x128xf32>
    %86 = vector.broadcast %52 : vector<1x128xf32> to vector<32x128xf32>
    %87 = arith.addf %85, %86 : vector<32x128xf32>
    %cst_79 = arith.constant 0.000000e+00 : f32
    %88 = vector.broadcast %cst_79 : f32 to vector<32x128xf32>
    %89 = arith.cmpf ogt, %87, %88 : vector<32x128xf32>
    %90 = vector.broadcast %53 : vector<1x128xf32> to vector<32x128xf32>
    %91 = arith.mulf %90, %87 : vector<32x128xf32>
    %92 = arith.select %89, %87, %91 : vector<32x128xi1>, vector<32x128xf32>
    %c0_80 = arith.constant 0 : index
    %c0_81 = arith.constant 0 : index
    %93 = vector.load %arg10[%c0_80, %c0_81] : memref<32x128xf32, #tpu.memory_space<vmem>>, vector<32x128xf32>
    tpu.vector_store %arg10[%c0_80, %c0_81], %92 {strides = array<i32>} : memref<32x128xf32, #tpu.memory_space<vmem>>, vector<32x128xf32>,
    return
  }
}

</mosaic_0001>

<llo_original>
// kernel: tpu_custom_call.1
$region0: #{tpu_custom_call.1}
  #allocation0 [shape = 'u32[]', space=smem, size = 0x4, offset = 0x4, fixed_abs, tag = 'smem constant byte address 0x4 - core index']
  #allocation1 [shape = 'u32[144,128]{1,0:T(1,128)}', space=vmem, size = 0x12000, scoped, tag = 'internal scratch']
  #allocation2 [shape = 'f32[2,20,64]{2,1,0:T(8,128)}', space=vmem, size = 0x6000, scoped, tag = 'scratch operand']
  #allocation3 [shape = 'f32[2,20,128]{2,1,0:T(8,128)}', space=vmem, size = 0x6000, scoped, tag = 'scratch operand']
  %s0 = inlined_call_operand.hbm [shape: f32[2,16,64], index: 0, kind: input, shape index: {}]
  %s1 = inlined_call_operand.hbm [shape: f32[3,64,128], index: 1, kind: input, shape index: {}]
  %s2 = inlined_call_operand.hbm [shape: f32[3,128,128], index: 2, kind: input, shape index: {}]
  %s3 = inlined_call_operand.hbm [shape: f32[128,128], index: 3, kind: input, shape index: {}]
  %s4 = inlined_call_operand.vmem [shape: f32[1,128], index: 4, kind: input, shape index: {}]
  %s5 = inlined_call_operand.vmem [shape: f32[1,128], index: 5, kind: input, shape index: {}]
  %s6 = inlined_call_operand.vmem [shape: f32[1,128], index: 6, kind: input, shape index: {}]
  %s7 = inlined_call_operand.vmem [shape: f32[1,128], index: 7, kind: input, shape index: {}]
  %s8 = inlined_call_operand.vmem [shape: f32[1,128], index: 8, kind: input, shape index: {}]
  %s9 = inlined_call_operand.vmem [shape: f32[1,128], index: 9, kind: input, shape index: {}]
  %s10 = inlined_call_operand.hbm [shape: f32[32,128], index: 10, kind: output, shape index: {}]
  %s11 = sld [smem:[#allocation0]]
  $region66: #{tpu_custom_call.1} parent=0
    _
  %s13 = ssub.s32 1, %s11
  %s14 = scalar_select 0, %s13, %s11
  $region1: #{tpu_custom_call.1} parent=0
    #allocation4 [shape = 'u8[16384]{0}', space=vmem, size = 0x4000, scoped, tag = 'input window, operand 0, single buffered']
    #allocation5 [shape = 's32[1]{0}', space=sflag, size = 0x4, scoped, tag = 'scoped memory for tpu_custom_call.1']
    #allocation6 [shape = 's32[1]{0}', space=sflag, size = 0x4, scoped, tag = 'scoped memory for tpu_custom_call.1']
    #allocation7 [shape = 'u8[98304]{0}', space=vmem, size = 0x18000, scoped, tag = 'input window, operand 1, single buffered']
    #allocation8 [shape = 's32[1]{0}', space=sflag, size = 0x4, scoped, tag = 'scoped memory for tpu_custom_call.1']
    #allocation9 [shape = 'u8[196608]{0}', space=vmem, size = 0x30000, scoped, tag = 'input window, operand 2, single buffered']
    #allocation10 [shape = 'u8[65536]{0}', space=vmem, size = 0x10000, scoped, tag = 'input window, operand 3, single buffered']
    #allocation11 [shape = 's32[1]{0}', space=sflag, size = 0x4, scoped, tag = 'scoped memory for tpu_custom_call.1']
    #allocation12 [shape = 'u8[16384]{0}', space=vmem, size = 0x4000, scoped, tag = 'output window, operand 0, single buffered']
    %15 = vsyncpa [#allocation5], 0
    %16 = vsyncpa [#allocation8], 0
    %17 = vsyncpa [#allocation11], 0
    %18 = vsyncpa [#allocation6], 0
    // Predicated region
    $region2: #{tpu_custom_call.1} parent=1 // pred_check
      _
    $region3: #{tpu_custom_call.1} parent=1 // pred_check_branch
      %20 = sbr.rel (0) target = $region5
    $region4: #{tpu_custom_call.1} parent=1 // pred_region
      %s22 = ssub.s32 512, 512
      %23 = vsyncadd [#allocation5], %s22
      %s24 = sshll.u32 [#allocation4], 4
      %s25 = int_to_ptr.vmem [resolvable:$true] %s24
      %30 = dma.hbm_to_vmem [thread:$0]  %s0, 512, %s25, [#allocation5], 128, 128, 8
    $region5: #{tpu_custom_call.1} parent=1 // pred_fallthru
      _
    // Predicated region
    $region6: #{tpu_custom_call.1} parent=1 // pred_check
      _
    $region7: #{tpu_custom_call.1} parent=1 // pred_check_branch
      %32 = sbr.rel (0) target = $region9
    $region8: #{tpu_custom_call.1} parent=1 // pred_region
      %s34 = ssub.s32 3072, 3072
      %35 = vsyncadd [#allocation8], %s34
      %s36 = sshll.u32 [#allocation7], 4
      %s37 = int_to_ptr.vmem [resolvable:$true] %s36
      %42 = dma.hbm_to_vmem [thread:$0]  %s1, 3072, %s37, [#allocation8], 128, 128, 8
    $region9: #{tpu_custom_call.1} parent=1 // pred_fallthru
      _
    // Predicated region
    $region10: #{tpu_custom_call.1} parent=1 // pred_check
      _
    $region11: #{tpu_custom_call.1} parent=1 // pred_check_branch
      %44 = sbr.rel (0) target = $region13
    $region12: #{tpu_custom_call.1} parent=1 // pred_region
      %s46 = ssub.s32 6144, 6144
      %47 = vsyncadd [#allocation8], %s46
      %s48 = sshll.u32 [#allocation9], 4
      %s49 = int_to_ptr.vmem [resolvable:$true] %s48
      %54 = dma.hbm_to_vmem [thread:$0]  %s2, 6144, %s49, [#allocation8], 128, 128, 8
    $region13: #{tpu_custom_call.1} parent=1 // pred_fallthru
      _
    // Predicated region
    $region14: #{tpu_custom_call.1} parent=1 // pred_check
      _
    $region15: #{tpu_custom_call.1} parent=1 // pred_check_branch
      %56 = sbr.rel (0) target = $region17
    $region16: #{tpu_custom_call.1} parent=1 // pred_region
      %s58 = ssub.s32 2048, 2048
      %59 = vsyncadd [#allocation11], %s58
      %s60 = sshll.u32 [#allocation10], 4
      %s61 = int_to_ptr.vmem [resolvable:$true] %s60
      %66 = dma.hbm_to_vmem [thread:$0]  %s3, 2048, %s61, [#allocation11], 128, 128, 8
    $region17: #{tpu_custom_call.1} parent=1 // pred_fallthru
      _
    // Predicated region
    $region18: #{tpu_custom_call.1} parent=1 // pred_check
      _
    $region19: #{tpu_custom_call.1} parent=1 // pred_check_branch
      %68 = sbr.rel (0) target = $region21
    $region20: #{tpu_custom_call.1} parent=1 // pred_region
      _
    $region21: #{tpu_custom_call.1} parent=1 // pred_fallthru
      _
    // Predicated region
    $region22: #{tpu_custom_call.1} parent=1 // pred_check
      _
    $region23: #{tpu_custom_call.1} parent=1 // pred_check_branch
      %70 = sbr.rel (0) target = $region25
    $region24: #{tpu_custom_call.1} parent=1 // pred_region
      _
    $region25: #{tpu_custom_call.1} parent=1 // pred_fallthru
      _
    // Predicated region
    $region26: #{tpu_custom_call.1} parent=1 // pred_check
      _
    $region27: #{tpu_custom_call.1} parent=1 // pred_check_branch
      %72 = sbr.rel (0) target = $region29
    $region28: #{tpu_custom_call.1} parent=1 // pred_region
      _
    $region29: #{tpu_custom_call.1} parent=1 // pred_fallthru
      _
    // Predicated region
    $region30: #{tpu_custom_call.1} parent=1 // pred_check
      _
    $region31: #{tpu_custom_call.1} parent=1 // pred_check_branch
      %74 = sbr.rel (0) target = $region33
    $region32: #{tpu_custom_call.1} parent=1 // pred_region
      _
    $region33: #{tpu_custom_call.1} parent=1 // pred_fallthru
      _
    // Predicated region
    $region34: #{tpu_custom_call.1} parent=1 // pred_check
      _
    $region35: #{tpu_custom_call.1} parent=1 // pred_check_branch
      %76 = sbr.rel (0) target = $region37
    $region36: #{tpu_custom_call.1} parent=1 // pred_region
      _
    $region37: #{tpu_custom_call.1} parent=1 // pred_fallthru
      _
    // Predicated region
    $region38: #{tpu_custom_call.1} parent=1 // pred_check
      _
    $region39: #{tpu_custom_call.1} parent=1 // pred_check_branch
      %78 = sbr.rel (0) target = $region41
    $region40: #{tpu_custom_call.1} parent=1 // pred_region
      _
    $region41: #{tpu_custom_call.1} parent=1 // pred_fallthru
      _
    // Predicated region
    $region42: #{tpu_custom_call.1} parent=1 // pred_check
      _
    $region43: #{tpu_custom_call.1} parent=1 // pred_check_branch
      %80 = sbr.rel (0) target = $region45
    $region44: #{tpu_custom_call.1} parent=1 // pred_region
      %81 = dma.done [#allocation5], 512
    $region45: #{tpu_custom_call.1} parent=1 // pred_fallthru
      _
    // Predicated region
    $region46: #{tpu_custom_call.1} parent=1 // pred_check
      _
    $region47: #{tpu_custom_call.1} parent=1 // pred_check_branch
      %83 = sbr.rel (0) target = $region49
    $region48: #{tpu_custom_call.1} parent=1 // pred_region
      %84 = dma.done [#allocation8], 3072
    $region49: #{tpu_custom_call.1} parent=1 // pred_fallthru
      _
    // Predicated region
    $region50: #{tpu_custom_call.1} parent=1 // pred_check
      _
    $region51: #{tpu_custom_call.1} parent=1 // pred_check_branch
      %86 = sbr.rel (0) target = $region53
    $region52: #{tpu_custom_call.1} parent=1 // pred_region
      %87 = dma.done [#allocation8], 6144
    $region53: #{tpu_custom_call.1} parent=1 // pred_fallthru
      _
    // Predicated region
    $region54: #{tpu_custom_call.1} parent=1 // pred_check
      _
    $region55: #{tpu_custom_call.1} parent=1 // pred_check_branch
      %89 = sbr.rel (0) target = $region57
    $region56: #{tpu_custom_call.1} parent=1 // pred_region
      %90 = dma.done [#allocation11], 2048
    $region57: #{tpu_custom_call.1} parent=1 // pred_fallthru
      _
    %v91 = vld [vmem:[#allocation10] sm:$0xff]
    %v92 = vld [vmem:[#allocation10 + $0x8] sm:$0xff]
    %v93 = vld [vmem:[#allocation10 + $0x10] sm:$0xff]
    %v94 = vld [vmem:[#allocation10 + $0x18] sm:$0xff]
    %v95 = vld [vmem:[#allocation10 + $0x20] sm:$0xff]
    %v96 = vld [vmem:[#allocation10 + $0x28] sm:$0xff]
    %v97 = vld [vmem:[#allocation10 + $0x30] sm:$0xff]
    %v98 = vld [vmem:[#allocation10 + $0x38] sm:$0xff]
    %v99 = vld [vmem:[#allocation10 + $0x40] sm:$0xff]
    %v100 = vld [vmem:[#allocation10 + $0x48] sm:$0xff]
    %v101 = vld [vmem:[#allocation10 + $0x50] sm:$0xff]
    %v102 = vld [vmem:[#allocation10 + $0x58] sm:$0xff]
    %v103 = vld [vmem:[#allocation10 + $0x60] sm:$0xff]
    %v104 = vld [vmem:[#allocation10 + $0x68] sm:$0xff]
    %v105 = vld [vmem:[#allocation10 + $0x70] sm:$0xff]
    %v106 = vld [vmem:[#allocation10 + $0x78] sm:$0xff]
    %vm107 = vcmask 523264
    %108 = vst.msk [vmem:[#allocation2] sm:$0xff] %vm107, 0.0
    %109 = vst.msk [vmem:[#allocation2 + $0x8] sm:$0xff] %vm107, 0.0
    %vm110 = vcmask 519168
    %111 = vst.msk [vmem:[#allocation2 + $0x10] sm:$0xf] %vm110, 0.0
    %112 = vst.msk [vmem:[#allocation2 + $0x18] sm:$0xff] %vm107, 0.0
    %113 = vst.msk [vmem:[#allocation2 + $0x20] sm:$0xff] %vm107, 0.0
    %114 = vst.msk [vmem:[#allocation2 + $0x28] sm:$0xf] %vm110, 0.0
    %v115 = vld [vmem:[#allocation4] sm:$0xff]
    %v116 = vld [vmem:[#allocation4 + $0x8] sm:$0xff]
    %v117 = vld [vmem:[#allocation4 + $0x10] sm:$0xff]
    %v118 = vld [vmem:[#allocation4 + $0x18] sm:$0xff]
    %119 = vst.msk [vmem:[#allocation2 + $0x2] sm:$0xff] %vm107, %v115
    %120 = vst.msk [vmem:[#allocation2 + $0xa] sm:$0xff] %vm107, %v116
    %121 = vst.msk [vmem:[#allocation2 + $0x1a] sm:$0xff] %vm107, %v117
    %122 = vst.msk [vmem:[#allocation2 + $0x22] sm:$0xff] %vm107, %v118
    %v123 = vld [vmem:[%s4] sm:$0x1]
    %v124 = vld [vmem:[%s5] sm:$0x1]
    %v125 = vld [vmem:[%s6] sm:$0x1]
    %v126 = vld [vmem:[#allocation2] sm:$0xff]
    %v127 = vld [vmem:[#allocation2 + $0x8] sm:$0xff]
    %v128 = vld [vmem:[#allocation2 + $0x18] sm:$0xff]
    %v129 = vld [vmem:[#allocation2 + $0x20] sm:$0xff]
    %v130 = vld [vmem:[#allocation7] sm:$0xff]
    %v131 = vld [vmem:[#allocation7 + $0x8] sm:$0xff]
    %v132 = vld [vmem:[#allocation7 + $0x10] sm:$0xff]
    %v133 = vld [vmem:[#allocation7 + $0x18] sm:$0xff]
    %v134 = vld [vmem:[#allocation7 + $0x20] sm:$0xff]
    %v135 = vld [vmem:[#allocation7 + $0x28] sm:$0xff]
    %v136 = vld [vmem:[#allocation7 + $0x30] sm:$0xff]
    %v137 = vld [vmem:[#allocation7 + $0x38] sm:$0xff]
    %v138 = vld [vmem:[#allocation2 + $0x2] sm:$0xff]
    %v139 = vld [vmem:[#allocation2 + $0xa] sm:$0xff]
    %v140 = vld [vmem:[#allocation2 + $0x1a] sm:$0xff]
    %v141 = vld [vmem:[#allocation2 + $0x22] sm:$0xff]
    %s142 = scalar_lea.vmem [#allocation7], 64
    %v143 = vld [vmem:[%s142] sm:$0xff]
    %v144 = vld [vmem:[%s142 + $0x8] sm:$0xff]
    %v145 = vld [vmem:[%s142 + $0x10] sm:$0xff]
    %v146 = vld [vmem:[%s142 + $0x18] sm:$0xff]
    %v147 = vld [vmem:[%s142 + $0x20] sm:$0xff]
    %v148 = vld [vmem:[%s142 + $0x28] sm:$0xff]
    %v149 = vld [vmem:[%s142 + $0x30] sm:$0xff]
    %v150 = vld [vmem:[%s142 + $0x38] sm:$0xff]
    %v152 = vsel %vm107, %v138, 0
    %v155 = vsel %vm107, %v139, 0
    %v158 = vsel %vm107, %v140, 0
    %v161 = vsel %vm107, %v141, 0
    %163 = vmatprep.subr.mxu0 0.0
    %164 = vmatpush1.msra.mxu0 %v143
    %165 = vmatprep.subr.mxu0 0.0
    %166 = vmatpush1.msra.mxu0 %v144
    %167 = vmatprep.subr.mxu0 0.0
    %168 = vmatpush1.msra.mxu0 %v145
    %169 = vmatprep.subr.mxu0 0.0
    %170 = vmatpush1.msra.mxu0 %v146
    %171 = vmatprep.subr.mxu0 0.0
    %172 = vmatpush1.msra.mxu0 %v147
    %173 = vmatprep.subr.mxu0 0.0
    %174 = vmatpush1.msra.mxu0 %v148
    %175 = vmatprep.subr.mxu0 0.0
    %176 = vmatpush1.msra.mxu0 %v149
    %177 = vmatprep.subr.mxu0 0.0
    %178 = vmatpush1.msra.mxu0 %v150
    %179 = vmatprep.subr.mxu0 0.0
    %180 = vmatpush1.msra.mxu0 0.0
    %181 = vmatprep.subr.mxu0 0.0
    %182 = vmatpush1.msra.mxu0 0.0
    %183 = vmatprep.subr.mxu0 0.0
    %184 = vmatpush1.msra.mxu0 0.0
    %185 = vmatprep.subr.mxu0 0.0
    %186 = vmatpush1.msra.mxu0 0.0
    %187 = vmatprep.subr.mxu0 0.0
    %188 = vmatpush1.msra.mxu0 0.0
    %189 = vmatprep.subr.mxu0 0.0
    %190 = vmatpush1.msra.mxu0 0.0
    %191 = vmatprep.subr.mxu0 0.0
    %192 = vmatpush1.msra.mxu0 0.0
    %193 = vmatprep.subr.mxu0 0.0
    %194 = vmatpush1.msra.mxu0 0.0
    %195 = vmatprep.subr.mxu0 0.0
    %196 = vmatpush1.msra.mxu0 0.0
    %197 = vmatprep.subr.mxu0 0.0
    %198 = vmatpush1.msra.mxu0 0.0
    %199 = vmatprep.subr.mxu0 0.0
    %200 = vmatpush1.msra.mxu0 0.0
    %201 = vmatprep.subr.mxu0 0.0
    %202 = vmatpush1.msra.mxu0 0.0
    %203 = vmatprep.subr.mxu0 0.0
    %204 = vmatpush1.msra.mxu0 0.0
    %205 = vmatprep.subr.mxu0 0.0
    %206 = vmatpush1.msra.mxu0 0.0
    %207 = vmatprep.subr.mxu0 0.0
    %208 = vmatpush1.msra.mxu0 0.0
    %209 = vmatprep.subr.mxu0 0.0
    %210 = vmatpush1.msra.mxu0 0.0
    %211 = vmatprep.subr.mxu0 0.0
    %212 = vmatpush1.msra.mxu0 0.0
    %213 = vmatprep.subr.mxu0 0.0
    %214 = vmatpush1.msra.mxu0 0.0
    %215 = vmatprep.subr.mxu0 0.0
    %216 = vmatpush1.msra.mxu0 0.0
    %217 = vmatprep.subr.mxu0 0.0
    %218 = vmatpush1.msra.mxu0 0.0
    %219 = vmatprep.subr.mxu0 0.0
    %220 = vmatpush1.msra.mxu0 0.0
    %221 = vmatprep.subr.mxu0 0.0
    %222 = vmatpush1.msra.mxu0 0.0
    %223 = vmatprep.subr.mxu0 0.0
    %224 = vmatpush1.msra.mxu0 0.0
    %225 = vmatprep.subr.mxu0 0.0
    %226 = vmatpush1.msra.mxu0 0.0
    %227 = vmatprep.mubr.f32.mxu0 0.0
    %228 = vmatmul.mubr.f32.gmra.mrb[0].mxu0 %v152
    %v229 = vpop.f32.mrb[0].mxu0
    %v230 = vadd.f32 0.0, %v229
    %v231 = vpop.f32.mrb[0].mxu0
    %232 = vmatprep.mubr.f32.mxu0 0.0
    %233 = vmatmul.mubr.f32.gmra.mrb[0].mxu0 %v155
    %v234 = vpop.f32.mrb[0].mxu0
    %v235 = vadd.f32 0.0, %v234
    %v236 = vpop.f32.mrb[0].mxu0
    %237 = vmatprep.mubr.f32.mxu0 0.0
    %238 = vmatmul.mubr.f32.gmra.mrb[0].mxu0 %v158
    %v239 = vpop.f32.mrb[0].mxu0
    %v240 = vadd.f32 0.0, %v239
    %v241 = vpop.f32.mrb[0].mxu0
    %242 = vmatprep.mubr.f32.mxu0 0.0
    %243 = vmatmul.mubr.f32.gmra.mrb[0].mxu0 %v161
    %v244 = vpop.f32.mrb[0].mxu0
    %v245 = vadd.f32 0.0, %v244
    %v246 = vpop.f32.mrb[0].mxu0
    %247 = vdwg.mxu0
    %v249 = vsel %vm107, %v126, 0
    %v252 = vsel %vm107, %v127, 0
    %v255 = vsel %vm107, %v128, 0
    %v258 = vsel %vm107, %v129, 0
    %260 = vmatprep.subr.mxu0 0.0
    %261 = vmatpush1.msra.mxu0 %v130
    %262 = vmatprep.subr.mxu0 0.0
    %263 = vmatpush1.msra.mxu0 %v131
    %264 = vmatprep.subr.mxu0 0.0
    %265 = vmatpush1.msra.mxu0 %v132
    %266 = vmatprep.subr.mxu0 0.0
    %267 = vmatpush1.msra.mxu0 %v133
    %268 = vmatprep.subr.mxu0 0.0
    %269 = vmatpush1.msra.mxu0 %v134
    %270 = vmatprep.subr.mxu0 0.0
    %271 = vmatpush1.msra.mxu0 %v135
    %272 = vmatprep.subr.mxu0 0.0
    %273 = vmatpush1.msra.mxu0 %v136
    %274 = vmatprep.subr.mxu0 0.0
    %275 = vmatpush1.msra.mxu0 %v137
    %276 = vmatprep.subr.mxu0 0.0
    %277 = vmatpush1.msra.mxu0 0.0
    %278 = vmatprep.subr.mxu0 0.0
    %279 = vmatpush1.msra.mxu0 0.0
    %280 = vmatprep.subr.mxu0 0.0
    %281 = vmatpush1.msra.mxu0 0.0
    %282 = vmatprep.subr.mxu0 0.0
    %283 = vmatpush1.msra.mxu0 0.0
    %284 = vmatprep.subr.mxu0 0.0
    %285 = vmatpush1.msra.mxu0 0.0
    %286 = vmatprep.subr.mxu0 0.0
    %287 = vmatpush1.msra.mxu0 0.0
    %288 = vmatprep.subr.mxu0 0.0
    %289 = vmatpush1.msra.mxu0 0.0
    %290 = vmatprep.subr.mxu0 0.0
    %291 = vmatpush1.msra.mxu0 0.0
    %292 = vmatprep.subr.mxu0 0.0
    %293 = vmatpush1.msra.mxu0 0.0
    %294 = vmatprep.subr.mxu0 0.0
    %295 = vmatpush1.msra.mxu0 0.0
    %296 = vmatprep.subr.mxu0 0.0
    %297 = vmatpush1.msra.mxu0 0.0
    %298 = vmatprep.subr.mxu0 0.0
    %299 = vmatpush1.msra.mxu0 0.0
    %300 = vmatprep.subr.mxu0 0.0
    %301 = vmatpush1.msra.mxu0 0.0
    %302 = vmatprep.subr.mxu0 0.0
    %303 = vmatpush1.msra.mxu0 0.0
    %304 = vmatprep.subr.mxu0 0.0
    %305 = vmatpush1.msra.mxu0 0.0
    %306 = vmatprep.subr.mxu0 0.0
    %307 = vmatpush1.msra.mxu0 0.0
    %308 = vmatprep.subr.mxu0 0.0
    %309 = vmatpush1.msra.mxu0 0.0
    %310 = vmatprep.subr.mxu0 0.0
    %311 = vmatpush1.msra.mxu0 0.0
    %312 = vmatprep.subr.mxu0 0.0
    %313 = vmatpush1.msra.mxu0 0.0
    %314 = vmatprep.subr.mxu0 0.0
    %315 = vmatpush1.msra.mxu0 0.0
    %316 = vmatprep.subr.mxu0 0.0
    %317 = vmatpush1.msra.mxu0 0.0
    %318 = vmatprep.subr.mxu0 0.0
    %319 = vmatpush1.msra.mxu0 0.0
    %320 = vmatprep.subr.mxu0 0.0
    %321 = vmatpush1.msra.mxu0 0.0
    %322 = vmatprep.subr.mxu0 0.0
    %323 = vmatpush1.msra.mxu0 0.0
    %324 = vmatprep.mubr.f32.mxu0 0.0
    %325 = vmatmul.mubr.f32.gmra.mrb[0].mxu0 %v249
    %v326 = vpop.f32.mrb[0].mxu0
    %v327 = vadd.f32 %v230, %v326
    %v328 = vpop.f32.mrb[0].mxu0
    %329 = vmatprep.mubr.f32.mxu0 0.0
    %330 = vmatmul.mubr.f32.gmra.mrb[0].mxu0 %v252
    %v331 = vpop.f32.mrb[0].mxu0
    %v332 = vadd.f32 %v235, %v331
    %v333 = vpop.f32.mrb[0].mxu0
    %334 = vmatprep.mubr.f32.mxu0 0.0
    %335 = vmatmul.mubr.f32.gmra.mrb[0].mxu0 %v255
    %v336 = vpop.f32.mrb[0].mxu0
    %v337 = vadd.f32 %v240, %v336
    %v338 = vpop.f32.mrb[0].mxu0
    %339 = vmatprep.mubr.f32.mxu0 0.0
    %340 = vmatmul.mubr.f32.gmra.mrb[0].mxu0 %v258
    %v341 = vpop.f32.mrb[0].mxu0
    %v342 = vadd.f32 %v245, %v341
    %v343 = vpop.f32.mrb[0].mxu0
    %344 = vdwg.mxu0
    %v345 = vld [vmem:[#allocation2 + $0x4] sm:$0xff]
    %v346 = vld [vmem:[#allocation2 + $0xc] sm:$0xff]
    %v347 = vld [vmem:[#allocation2 + $0x1c] sm:$0xff]
    %v348 = vld [vmem:[#allocation2 + $0x24] sm:$0xff]
    %s349 = scalar_lea.vmem [#allocation7], 128
    %v350 = vld [vmem:[%s349] sm:$0xff]
    %v351 = vld [vmem:[%s349 + $0x8] sm:$0xff]
    %v352 = vld [vmem:[%s349 + $0x10] sm:$0xff]
    %v353 = vld [vmem:[%s349 + $0x18] sm:$0xff]
    %v354 = vld [vmem:[%s349 + $0x20] sm:$0xff]
    %v355 = vld [vmem:[%s349 + $0x28] sm:$0xff]
    %v356 = vld [vmem:[%s349 + $0x30] sm:$0xff]
    %v357 = vld [vmem:[%s349 + $0x38] sm:$0xff]
    %v359 = vsel %vm107, %v345, 0
    %v362 = vsel %vm107, %v346, 0
    %v365 = vsel %vm107, %v347, 0
    %v368 = vsel %vm107, %v348, 0
    %370 = vmatprep.subr.mxu0 0.0
    %371 = vmatpush1.msra.mxu0 %v350
    %372 = vmatprep.subr.mxu0 0.0
    %373 = vmatpush1.msra.mxu0 %v351
    %374 = vmatprep.subr.mxu0 0.0
    %375 = vmatpush1.msra.mxu0 %v352
    %376 = vmatprep.subr.mxu0 0.0
    %377 = vmatpush1.msra.mxu0 %v353
    %378 = vmatprep.subr.mxu0 0.0
    %379 = vmatpush1.msra.mxu0 %v354
    %380 = vmatprep.subr.mxu0 0.0
    %381 = vmatpush1.msra.mxu0 %v355
    %382 = vmatprep.subr.mxu0 0.0
    %383 = vmatpush1.msra.mxu0 %v356
    %384 = vmatprep.subr.mxu0 0.0
    %385 = vmatpush1.msra.mxu0 %v357
    %386 = vmatprep.subr.mxu0 0.0
    %387 = vmatpush1.msra.mxu0 0.0
    %388 = vmatprep.subr.mxu0 0.0
    %389 = vmatpush1.msra.mxu0 0.0
    %390 = vmatprep.subr.mxu0 0.0
    %391 = vmatpush1.msra.mxu0 0.0
    %392 = vmatprep.subr.mxu0 0.0
    %393 = vmatpush1.msra.mxu0 0.0
    %394 = vmatprep.subr.mxu0 0.0
    %395 = vmatpush1.msra.mxu0 0.0
    %396 = vmatprep.subr.mxu0 0.0
    %397 = vmatpush1.msra.mxu0 0.0
    %398 = vmatprep.subr.mxu0 0.0
    %399 = vmatpush1.msra.mxu0 0.0
    %400 = vmatprep.subr.mxu0 0.0
    %401 = vmatpush1.msra.mxu0 0.0
    %402 = vmatprep.subr.mxu0 0.0
    %403 = vmatpush1.msra.mxu0 0.0
    %404 = vmatprep.subr.mxu0 0.0
    %405 = vmatpush1.msra.mxu0 0.0
    %406 = vmatprep.subr.mxu0 0.0
    %407 = vmatpush1.msra.mxu0 0.0
    %408 = vmatprep.subr.mxu0 0.0
    %409 = vmatpush1.msra.mxu0 0.0
    %410 = vmatprep.subr.mxu0 0.0
    %411 = vmatpush1.msra.mxu0 0.0
    %412 = vmatprep.subr.mxu0 0.0
    %413 = vmatpush1.msra.mxu0 0.0
    %414 = vmatprep.subr.mxu0 0.0
    %415 = vmatpush1.msra.mxu0 0.0
    %416 = vmatprep.subr.mxu0 0.0
    %417 = vmatpush1.msra.mxu0 0.0
    %418 = vmatprep.subr.mxu0 0.0
    %419 = vmatpush1.msra.mxu0 0.0
    %420 = vmatprep.subr.mxu0 0.0
    %421 = vmatpush1.msra.mxu0 0.0
    %422 = vmatprep.subr.mxu0 0.0
    %423 = vmatpush1.msra.mxu0 0.0
    %424 = vmatprep.subr.mxu0 0.0
    %425 = vmatpush1.msra.mxu0 0.0
    %426 = vmatprep.subr.mxu0 0.0
    %427 = vmatpush1.msra.mxu0 0.0
    %428 = vmatprep.subr.mxu0 0.0
    %429 = vmatpush1.msra.mxu0 0.0
    %430 = vmatprep.subr.mxu0 0.0
    %431 = vmatpush1.msra.mxu0 0.0
    %432 = vmatprep.subr.mxu0 0.0
    %433 = vmatpush1.msra.mxu0 0.0
    %434 = vmatprep.mubr.f32.mxu0 0.0
    %435 = vmatmul.mubr.f32.gmra.mrb[0].mxu0 %v359
    %v436 = vpop.f32.mrb[0].mxu0
    %v437 = vadd.f32 0.0, %v436
    %v438 = vpop.f32.mrb[0].mxu0
    %439 = vmatprep.mubr.f32.mxu0 0.0
    %440 = vmatmul.mubr.f32.gmra.mrb[0].mxu0 %v362
    %v441 = vpop.f32.mrb[0].mxu0
    %v442 = vadd.f32 0.0, %v441
    %v443 = vpop.f32.mrb[0].mxu0
    %444 = vmatprep.mubr.f32.mxu0 0.0
    %445 = vmatmul.mubr.f32.gmra.mrb[0].mxu0 %v365
    %v446 = vpop.f32.mrb[0].mxu0
    %v447 = vadd.f32 0.0, %v446
    %v448 = vpop.f32.mrb[0].mxu0
    %449 = vmatprep.mubr.f32.mxu0 0.0
    %450 = vmatmul.mubr.f32.gmra.mrb[0].mxu0 %v368
    %v451 = vpop.f32.mrb[0].mxu0
    %v452 = vadd.f32 0.0, %v451
    %v453 = vpop.f32.mrb[0].mxu0
    %454 = vdwg.mxu0
    %v455 = vadd.f32 %v327, %v437
    %v456 = vadd.f32 %v332, %v442
    %v457 = vadd.f32 %v337, %v447
    %v458 = vadd.f32 %v342, %v452
    %459 = vmatprep.subr.mxu0 0.0
    %460 = vmatpush1.msra.mxu0 %v91
    %461 = vmatprep.subr.mxu0 0.0
    %462 = vmatpush1.msra.mxu0 %v92
    %463 = vmatprep.subr.mxu0 0.0
    %464 = vmatpush1.msra.mxu0 %v93
    %465 = vmatprep.subr.mxu0 0.0
    %466 = vmatpush1.msra.mxu0 %v94
    %467 = vmatprep.subr.mxu0 0.0
    %468 = vmatpush1.msra.mxu0 %v95
    %469 = vmatprep.subr.mxu0 0.0
    %470 = vmatpush1.msra.mxu0 %v96
    %471 = vmatprep.subr.mxu0 0.0
    %472 = vmatpush1.msra.mxu0 %v97
    %473 = vmatprep.subr.mxu0 0.0
    %474 = vmatpush1.msra.mxu0 %v98
    %475 = vmatprep.subr.mxu0 0.0
    %476 = vmatpush1.msra.mxu0 %v99
    %477 = vmatprep.subr.mxu0 0.0
    %478 = vmatpush1.msra.mxu0 %v100
    %479 = vmatprep.subr.mxu0 0.0
    %480 = vmatpush1.msra.mxu0 %v101
    %481 = vmatprep.subr.mxu0 0.0
    %482 = vmatpush1.msra.mxu0 %v102
    %483 = vmatprep.subr.mxu0 0.0
    %484 = vmatpush1.msra.mxu0 %v103
    %485 = vmatprep.subr.mxu0 0.0
    %486 = vmatpush1.msra.mxu0 %v104
    %487 = vmatprep.subr.mxu0 0.0
    %488 = vmatpush1.msra.mxu0 %v105
    %489 = vmatprep.subr.mxu0 0.0
    %490 = vmatpush1.msra.mxu0 %v106
    %491 = vmatprep.subr.mxu0 0.0
    %492 = vmatpush1.msra.mxu0 0.0
    %493 = vmatprep.subr.mxu0 0.0
    %494 = vmatpush1.msra.mxu0 0.0
    %495 = vmatprep.subr.mxu0 0.0
    %496 = vmatpush1.msra.mxu0 0.0
    %497 = vmatprep.subr.mxu0 0.0
    %498 = vmatpush1.msra.mxu0 0.0
    %499 = vmatprep.subr.mxu0 0.0
    %500 = vmatpush1.msra.mxu0 0.0
    %501 = vmatprep.subr.mxu0 0.0
    %502 = vmatpush1.msra.mxu0 0.0
    %503 = vmatprep.subr.mxu0 0.0
    %504 = vmatpush1.msra.mxu0 0.0
    %505 = vmatprep.subr.mxu0 0.0
    %506 = vmatpush1.msra.mxu0 0.0
    %507 = vmatprep.subr.mxu0 0.0
    %508 = vmatpush1.msra.mxu0 0.0
    %509 = vmatprep.subr.mxu0 0.0
    %510 = vmatpush1.msra.mxu0 0.0
    %511 = vmatprep.subr.mxu0 0.0
    %512 = vmatpush1.msra.mxu0 0.0
    %513 = vmatprep.subr.mxu0 0.0
    %514 = vmatpush1.msra.mxu0 0.0
    %515 = vmatprep.subr.mxu0 0.0
    %516 = vmatpush1.msra.mxu0 0.0
    %517 = vmatprep.subr.mxu0 0.0
    %518 = vmatpush1.msra.mxu0 0.0
    %519 = vmatprep.subr.mxu0 0.0
    %520 = vmatpush1.msra.mxu0 0.0
    %521 = vmatprep.subr.mxu0 0.0
    %522 = vmatpush1.msra.mxu0 0.0
    %523 = vmatprep.mubr.f32.mxu0 0.0
    %524 = vmatmul.mubr.f32.gmra.mrb[0].mxu0 %v455
    %v525 = vpop.f32.mrb[0].mxu0
    %v526 = vadd.f32 0.0, %v525
    %v527 = vpop.f32.mrb[0].mxu0
    %528 = vmatprep.mubr.f32.mxu0 0.0
    %529 = vmatmul.mubr.f32.gmra.mrb[0].mxu0 %v456
    %v530 = vpop.f32.mrb[0].mxu0
    %v531 = vadd.f32 0.0, %v530
    %v532 = vpop.f32.mrb[0].mxu0
    %533 = vmatprep.mubr.f32.mxu0 0.0
    %534 = vmatmul.mubr.f32.gmra.mrb[0].mxu0 %v457
    %v535 = vpop.f32.mrb[0].mxu0
    %v536 = vadd.f32 0.0, %v535
    %v537 = vpop.f32.mrb[0].mxu0
    %538 = vmatprep.mubr.f32.mxu0 0.0
    %539 = vmatmul.mubr.f32.gmra.mrb[0].mxu0 %v458
    %v540 = vpop.f32.mrb[0].mxu0
    %v541 = vadd.f32 0.0, %v540
    %v542 = vpop.f32.mrb[0].mxu0
    %543 = vdwg.mxu0
    %v544 = vadd.f32 %v526, %v531
    %v545 = vadd.f32 %v544, %v536
    %v546 = vadd.f32 %v545, %v541
    %v547 = vrot.slane %v546, 4
    %v548 = vadd.f32 %v546, %v547
    %v549 = vrot.slane %v548, 2
    %v550 = vadd.f32 %v548, %v549
    %v551 = vrot.slane %v550, 1
    %v552 = vadd.f32 %v550, %v551
    %v553 = vsub.f32 %v455, %v552
    %v554 = vsub.f32 %v456, %v552
    %v555 = vsub.f32 %v457, %v552
    %v556 = vsub.f32 %v458, %v552
    %v557 = vmul.f32 %v553, %v553
    %v558 = vmul.f32 %v554, %v554
    %v559 = vmul.f32 %v555, %v555
    %v560 = vmul.f32 %v556, %v556
    %561 = vmatprep.subr.mxu0 0.0
    %562 = vmatpush1.msra.mxu0 %v91
    %563 = vmatprep.subr.mxu0 0.0
    %564 = vmatpush1.msra.mxu0 %v92
    %565 = vmatprep.subr.mxu0 0.0
    %566 = vmatpush1.msra.mxu0 %v93
    %567 = vmatprep.subr.mxu0 0.0
    %568 = vmatpush1.msra.mxu0 %v94
    %569 = vmatprep.subr.mxu0 0.0
    %570 = vmatpush1.msra.mxu0 %v95
    %571 = vmatprep.subr.mxu0 0.0
    %572 = vmatpush1.msra.mxu0 %v96
    %573 = vmatprep.subr.mxu0 0.0
    %574 = vmatpush1.msra.mxu0 %v97
    %575 = vmatprep.subr.mxu0 0.0
    %576 = vmatpush1.msra.mxu0 %v98
    %577 = vmatprep.subr.mxu0 0.0
    %578 = vmatpush1.msra.mxu0 %v99
    %579 = vmatprep.subr.mxu0 0.0
    %580 = vmatpush1.msra.mxu0 %v100
    %581 = vmatprep.subr.mxu0 0.0
    %582 = vmatpush1.msra.mxu0 %v101
    %583 = vmatprep.subr.mxu0 0.0
    %584 = vmatpush1.msra.mxu0 %v102
    %585 = vmatprep.subr.mxu0 0.0
    %586 = vmatpush1.msra.mxu0 %v103
    %587 = vmatprep.subr.mxu0 0.0
    %588 = vmatpush1.msra.mxu0 %v104
    %589 = vmatprep.subr.mxu0 0.0
    %590 = vmatpush1.msra.mxu0 %v105
    %591 = vmatprep.subr.mxu0 0.0
    %592 = vmatpush1.msra.mxu0 %v106
    %593 = vmatprep.subr.mxu0 0.0
    %594 = vmatpush1.msra.mxu0 0.0
    %595 = vmatprep.subr.mxu0 0.0
    %596 = vmatpush1.msra.mxu0 0.0
    %597 = vmatprep.subr.mxu0 0.0
    %598 = vmatpush1.msra.mxu0 0.0
    %599 = vmatprep.subr.mxu0 0.0
    %600 = vmatpush1.msra.mxu0 0.0
    %601 = vmatprep.subr.mxu0 0.0
    %602 = vmatpush1.msra.mxu0 0.0
    %603 = vmatprep.subr.mxu0 0.0
    %604 = vmatpush1.msra.mxu0 0.0
    %605 = vmatprep.subr.mxu0 0.0
    %606 = vmatpush1.msra.mxu0 0.0
    %607 = vmatprep.subr.mxu0 0.0
    %608 = vmatpush1.msra.mxu0 0.0
    %609 = vmatprep.subr.mxu0 0.0
    %610 = vmatpush1.msra.mxu0 0.0
    %611 = vmatprep.subr.mxu0 0.0
    %612 = vmatpush1.msra.mxu0 0.0
    %613 = vmatprep.subr.mxu0 0.0
    %614 = vmatpush1.msra.mxu0 0.0
    %615 = vmatprep.subr.mxu0 0.0
    %616 = vmatpush1.msra.mxu0 0.0
    %617 = vmatprep.subr.mxu0 0.0
    %618 = vmatpush1.msra.mxu0 0.0
    %619 = vmatprep.subr.mxu0 0.0
    %620 = vmatpush1.msra.mxu0 0.0
    %621 = vmatprep.subr.mxu0 0.0
    %622 = vmatpush1.msra.mxu0 0.0
    %623 = vmatprep.subr.mxu0 0.0
    %624 = vmatpush1.msra.mxu0 0.0
    %625 = vmatprep.mubr.f32.mxu0 0.0
    %626 = vmatmul.mubr.f32.gmra.mrb[0].mxu0 %v557
    %v627 = vpop.f32.mrb[0].mxu0
    %v628 = vadd.f32 0.0, %v627
    %v629 = vpop.f32.mrb[0].mxu0
    %630 = vmatprep.mubr.f32.mxu0 0.0
    %631 = vmatmul.mubr.f32.gmra.mrb[0].mxu0 %v558
    %v632 = vpop.f32.mrb[0].mxu0
    %v633 = vadd.f32 0.0, %v632
    %v634 = vpop.f32.mrb[0].mxu0
    %635 = vmatprep.mubr.f32.mxu0 0.0
    %636 = vmatmul.mubr.f32.gmra.mrb[0].mxu0 %v559
    %v637 = vpop.f32.mrb[0].mxu0
    %v638 = vadd.f32 0.0, %v637
    %v639 = vpop.f32.mrb[0].mxu0
    %640 = vmatprep.mubr.f32.mxu0 0.0
    %641 = vmatmul.mubr.f32.gmra.mrb[0].mxu0 %v560
    %v642 = vpop.f32.mrb[0].mxu0
    %v643 = vadd.f32 0.0, %v642
    %v644 = vpop.f32.mrb[0].mxu0
    %645 = vdwg.mxu0
    %v646 = vadd.f32 %v628, %v633
    %v647 = vadd.f32 %v646, %v638
    %v648 = vadd.f32 %v647, %v643
    %v649 = vrot.slane %v648, 4
    %v650 = vadd.f32 %v648, %v649
    %v651 = vrot.slane %v650, 2
    %v652 = vadd.f32 %v650, %v651
    %v653 = vrot.slane %v652, 1
    %v654 = vadd.f32 %v652, %v653
    %v655 = vadd.f32 %v654, 1e-05
    %v656 = vrsqrt.pop %v655
    %v657 = vmul.f32 %v123, %v656
    %v659 = vlaneseq
    %v660 = vshrl.u32 %v659, 7
    %v661 = vsub.s32 0, %v660
    %v662 = vrot.slane %v657, %v661
    %v664 = vmul.f32 %v553, %v662
    %v665 = vmul.f32 %v554, %v662
    %v666 = vmul.f32 %v555, %v662
    %v667 = vmul.f32 %v556, %v662
    %v669 = vlaneseq
    %v670 = vshrl.u32 %v669, 7
    %v671 = vsub.s32 0, %v670
    %v672 = vrot.slane %v124, %v671
    %v674 = vadd.f32 %v664, %v672
    %v675 = vadd.f32 %v665, %v672
    %v676 = vadd.f32 %v666, %v672
    %v677 = vadd.f32 %v667, %v672
    %vm678 = vcmp.gt.f32.partialorder %v674, 0.0
    %vm679 = vcmp.gt.f32.partialorder %v675, 0.0
    %vm680 = vcmp.gt.f32.partialorder %v676, 0.0
    %vm681 = vcmp.gt.f32.partialorder %v677, 0.0
    %v683 = vlaneseq
    %v684 = vshrl.u32 %v683, 7
    %v685 = vsub.s32 0, %v684
    %v686 = vrot.slane %v125, %v685
    %v688 = vmul.f32 %v686, %v674
    %v689 = vmul.f32 %v686, %v675
    %v690 = vmul.f32 %v686, %v676
    %v691 = vmul.f32 %v686, %v677
    %v692 = vsel %vm678, %v674, %v688
    %v693 = vsel %vm679, %v675, %v689
    %v694 = vsel %vm680, %v676, %v690
    %v695 = vsel %vm681, %v677, %v691
    %696 = vst [vmem:[#allocation3] sm:$0xff] 0.0
    %697 = vst [vmem:[#allocation3 + $0x8] sm:$0xff] 0.0
    %698 = vst [vmem:[#allocation3 + $0x10] sm:$0xf] 0.0
    %699 = vst [vmem:[#allocation3 + $0x18] sm:$0xff] 0.0
    %700 = vst [vmem:[#allocation3 + $0x20] sm:$0xff] 0.0
    %701 = vst [vmem:[#allocation3 + $0x28] sm:$0xf] 0.0
    %702 = vst [vmem:[#allocation3 + $0x2] sm:$0xff] %v692
    %703 = vst [vmem:[#allocation3 + $0xa] sm:$0xff] %v693
    %704 = vst [vmem:[#allocation3 + $0x1a] sm:$0xff] %v694
    %705 = vst [vmem:[#allocation3 + $0x22] sm:$0xff] %v695
    %v706 = vld [vmem:[%s7] sm:$0x1]
    %v707 = vld [vmem:[%s8] sm:$0x1]
    %v708 = vld [vmem:[%s9] sm:$0x1]
    %v709 = vld [vmem:[#allocation3] sm:$0xff]
    %v710 = vld [vmem:[#allocation3 + $0x8] sm:$0xff]
    %v711 = vld [vmem:[#allocation3 + $0x18] sm:$0xff]
    %v712 = vld [vmem:[#allocation3 + $0x20] sm:$0xff]
    %v713 = vld [vmem:[#allocation9] sm:$0xff]
    %v714 = vld [vmem:[#allocation9 + $0x8] sm:$0xff]
    %v715 = vld [vmem:[#allocation9 + $0x10] sm:$0xff]
    %v716 = vld [vmem:[#allocation9 + $0x18] sm:$0xff]
    %v717 = vld [vmem:[#allocation9 + $0x20] sm:$0xff]
    %v718 = vld [vmem:[#allocation9 + $0x28] sm:$0xff]
    %v719 = vld [vmem:[#allocation9 + $0x30] sm:$0xff]
    %v720 = vld [vmem:[#allocation9 + $0x38] sm:$0xff]
    %v721 = vld [vmem:[#allocation9 + $0x40] sm:$0xff]
    %v722 = vld [vmem:[#allocation9 + $0x48] sm:$0xff]
    %v723 = vld [vmem:[#allocation9 + $0x50] sm:$0xff]
    %v724 = vld [vmem:[#allocation9 + $0x58] sm:$0xff]
    %v725 = vld [vmem:[#allocation9 + $0x60] sm:$0xff]
    %v726 = vld [vmem:[#allocation9 + $0x68] sm:$0xff]
    %v727 = vld [vmem:[#allocation9 + $0x70] sm:$0xff]
    %v728 = vld [vmem:[#allocation9 + $0x78] sm:$0xff]
    %v729 = vld [vmem:[#allocation3 + $0x2] sm:$0xff]
    %v730 = vld [vmem:[#allocation3 + $0xa] sm:$0xff]
    %v731 = vld [vmem:[#allocation3 + $0x1a] sm:$0xff]
    %v732 = vld [vmem:[#allocation3 + $0x22] sm:$0xff]
    %s733 = scalar_lea.vmem [#allocation9], 128
    %v734 = vld [vmem:[%s733] sm:$0xff]
    %v735 = vld [vmem:[%s733 + $0x8] sm:$0xff]
    %v736 = vld [vmem:[%s733 + $0x10] sm:$0xff]
    %v737 = vld [vmem:[%s733 + $0x18] sm:$0xff]
    %v738 = vld [vmem:[%s733 + $0x20] sm:$0xff]
    %v739 = vld [vmem:[%s733 + $0x28] sm:$0xff]
    %v740 = vld [vmem:[%s733 + $0x30] sm:$0xff]
    %v741 = vld [vmem:[%s733 + $0x38] sm:$0xff]
    %v742 = vld [vmem:[%s733 + $0x40] sm:$0xff]
    %v743 = vld [vmem:[%s733 + $0x48] sm:$0xff]
    %v744 = vld [vmem:[%s733 + $0x50] sm:$0xff]
    %v745 = vld [vmem:[%s733 + $0x58] sm:$0xff]
    %v746 = vld [vmem:[%s733 + $0x60] sm:$0xff]
    %v747 = vld [vmem:[%s733 + $0x68] sm:$0xff]
    %v748 = vld [vmem:[%s733 + $0x70] sm:$0xff]
    %v749 = vld [vmem:[%s733 + $0x78] sm:$0xff]
    %750 = vmatprep.subr.mxu0 0.0
    %751 = vmatpush1.msra.mxu0 %v734
    %752 = vmatprep.subr.mxu0 0.0
    %753 = vmatpush1.msra.mxu0 %v735
    %754 = vmatprep.subr.mxu0 0.0
    %755 = vmatpush1.msra.mxu0 %v736
    %756 = vmatprep.subr.mxu0 0.0
    %757 = vmatpush1.msra.mxu0 %v737
    %758 = vmatprep.subr.mxu0 0.0
    %759 = vmatpush1.msra.mxu0 %v738
    %760 = vmatprep.subr.mxu0 0.0
    %761 = vmatpush1.msra.mxu0 %v739
    %762 = vmatprep.subr.mxu0 0.0
    %763 = vmatpush1.msra.mxu0 %v740
    %764 = vmatprep.subr.mxu0 0.0
    %765 = vmatpush1.msra.mxu0 %v741
    %766 = vmatprep.subr.mxu0 0.0
    %767 = vmatpush1.msra.mxu0 %v742
    %768 = vmatprep.subr.mxu0 0.0
    %769 = vmatpush1.msra.mxu0 %v743
    %770 = vmatprep.subr.mxu0 0.0
    %771 = vmatpush1.msra.mxu0 %v744
    %772 = vmatprep.subr.mxu0 0.0
    %773 = vmatpush1.msra.mxu0 %v745
    %774 = vmatprep.subr.mxu0 0.0
    %775 = vmatpush1.msra.mxu0 %v746
    %776 = vmatprep.subr.mxu0 0.0
    %777 = vmatpush1.msra.mxu0 %v747
    %778 = vmatprep.subr.mxu0 0.0
    %779 = vmatpush1.msra.mxu0 %v748
    %780 = vmatprep.subr.mxu0 0.0
    %781 = vmatpush1.msra.mxu0 %v749
    %782 = vmatprep.subr.mxu0 0.0
    %783 = vmatpush1.msra.mxu0 0.0
    %784 = vmatprep.subr.mxu0 0.0
    %785 = vmatpush1.msra.mxu0 0.0
    %786 = vmatprep.subr.mxu0 0.0
    %787 = vmatpush1.msra.mxu0 0.0
    %788 = vmatprep.subr.mxu0 0.0
    %789 = vmatpush1.msra.mxu0 0.0
    %790 = vmatprep.subr.mxu0 0.0
    %791 = vmatpush1.msra.mxu0 0.0
    %792 = vmatprep.subr.mxu0 0.0
    %793 = vmatpush1.msra.mxu0 0.0
    %794 = vmatprep.subr.mxu0 0.0
    %795 = vmatpush1.msra.mxu0 0.0
    %796 = vmatprep.subr.mxu0 0.0
    %797 = vmatpush1.msra.mxu0 0.0
    %798 = vmatprep.subr.mxu0 0.0
    %799 = vmatpush1.msra.mxu0 0.0
    %800 = vmatprep.subr.mxu0 0.0
    %801 = vmatpush1.msra.mxu0 0.0
    %802 = vmatprep.subr.mxu0 0.0
    %803 = vmatpush1.msra.mxu0 0.0
    %804 = vmatprep.subr.mxu0 0.0
    %805 = vmatpush1.msra.mxu0 0.0
    %806 = vmatprep.subr.mxu0 0.0
    %807 = vmatpush1.msra.mxu0 0.0
    %808 = vmatprep.subr.mxu0 0.0
    %809 = vmatpush1.msra.mxu0 0.0
    %810 = vmatprep.subr.mxu0 0.0
    %811 = vmatpush1.msra.mxu0 0.0
    %812 = vmatprep.subr.mxu0 0.0
    %813 = vmatpush1.msra.mxu0 0.0
    %814 = vmatprep.mubr.f32.mxu0 0.0
    %815 = vmatmul.mubr.f32.gmra.mrb[0].mxu0 %v729
    %v816 = vpop.f32.mrb[0].mxu0
    %v817 = vadd.f32 0.0, %v816
    %v818 = vpop.f32.mrb[0].mxu0
    %819 = vmatprep.mubr.f32.mxu0 0.0
    %820 = vmatmul.mubr.f32.gmra.mrb[0].mxu0 %v730
    %v821 = vpop.f32.mrb[0].mxu0
    %v822 = vadd.f32 0.0, %v821
    %v823 = vpop.f32.mrb[0].mxu0
    %824 = vmatprep.mubr.f32.mxu0 0.0
    %825 = vmatmul.mubr.f32.gmra.mrb[0].mxu0 %v731
    %v826 = vpop.f32.mrb[0].mxu0
    %v827 = vadd.f32 0.0, %v826
    %v828 = vpop.f32.mrb[0].mxu0
    %829 = vmatprep.mubr.f32.mxu0 0.0
    %830 = vmatmul.mubr.f32.gmra.mrb[0].mxu0 %v732
    %v831 = vpop.f32.mrb[0].mxu0
    %v832 = vadd.f32 0.0, %v831
    %v833 = vpop.f32.mrb[0].mxu0
    %834 = vdwg.mxu0
    %835 = vmatprep.subr.mxu0 0.0
    %836 = vmatpush1.msra.mxu0 %v713
    %837 = vmatprep.subr.mxu0 0.0
    %838 = vmatpush1.msra.mxu0 %v714
    %839 = vmatprep.subr.mxu0 0.0
    %840 = vmatpush1.msra.mxu0 %v715
    %841 = vmatprep.subr.mxu0 0.0
    %842 = vmatpush1.msra.mxu0 %v716
    %843 = vmatprep.subr.mxu0 0.0
    %844 = vmatpush1.msra.mxu0 %v717
    %845 = vmatprep.subr.mxu0 0.0
    %846 = vmatpush1.msra.mxu0 %v718
    %847 = vmatprep.subr.mxu0 0.0
    %848 = vmatpush1.msra.mxu0 %v719
    %849 = vmatprep.subr.mxu0 0.0
    %850 = vmatpush1.msra.mxu0 %v720
    %851 = vmatprep.subr.mxu0 0.0
    %852 = vmatpush1.msra.mxu0 %v721
    %853 = vmatprep.subr.mxu0 0.0
    %854 = vmatpush1.msra.mxu0 %v722
    %855 = vmatprep.subr.mxu0 0.0
    %856 = vmatpush1.msra.mxu0 %v723
    %857 = vmatprep.subr.mxu0 0.0
    %858 = vmatpush1.msra.mxu0 %v724
    %859 = vmatprep.subr.mxu0 0.0
    %860 = vmatpush1.msra.mxu0 %v725
    %861 = vmatprep.subr.mxu0 0.0
    %862 = vmatpush1.msra.mxu0 %v726
    %863 = vmatprep.subr.mxu0 0.0
    %864 = vmatpush1.msra.mxu0 %v727
    %865 = vmatprep.subr.mxu0 0.0
    %866 = vmatpush1.msra.mxu0 %v728
    %867 = vmatprep.subr.mxu0 0.0
    %868 = vmatpush1.msra.mxu0 0.0
    %869 = vmatprep.subr.mxu0 0.0
    %870 = vmatpush1.msra.mxu0 0.0
    %871 = vmatprep.subr.mxu0 0.0
    %872 = vmatpush1.msra.mxu0 0.0
    %873 = vmatprep.subr.mxu0 0.0
    %874 = vmatpush1.msra.mxu0 0.0
    %875 = vmatprep.subr.mxu0 0.0
    %876 = vmatpush1.msra.mxu0 0.0
    %877 = vmatprep.subr.mxu0 0.0
    %878 = vmatpush1.msra.mxu0 0.0
    %879 = vmatprep.subr.mxu0 0.0
    %880 = vmatpush1.msra.mxu0 0.0
    %881 = vmatprep.subr.mxu0 0.0
    %882 = vmatpush1.msra.mxu0 0.0
    %883 = vmatprep.subr.mxu0 0.0
    %884 = vmatpush1.msra.mxu0 0.0
    %885 = vmatprep.subr.mxu0 0.0
    %886 = vmatpush1.msra.mxu0 0.0
    %887 = vmatprep.subr.mxu0 0.0
    %888 = vmatpush1.msra.mxu0 0.0
    %889 = vmatprep.subr.mxu0 0.0
    %890 = vmatpush1.msra.mxu0 0.0
    %891 = vmatprep.subr.mxu0 0.0
    %892 = vmatpush1.msra.mxu0 0.0
    %893 = vmatprep.subr.mxu0 0.0
    %894 = vmatpush1.msra.mxu0 0.0
    %895 = vmatprep.subr.mxu0 0.0
    %896 = vmatpush1.msra.mxu0 0.0
    %897 = vmatprep.subr.mxu0 0.0
    %898 = vmatpush1.msra.mxu0 0.0
    %899 = vmatprep.mubr.f32.mxu0 0.0
    %900 = vmatmul.mubr.f32.gmra.mrb[0].mxu0 %v709
    %v901 = vpop.f32.mrb[0].mxu0
    %v902 = vadd.f32 %v817, %v901
    %v903 = vpop.f32.mrb[0].mxu0
    %904 = vmatprep.mubr.f32.mxu0 0.0
    %905 = vmatmul.mubr.f32.gmra.mrb[0].mxu0 %v710
    %v906 = vpop.f32.mrb[0].mxu0
    %v907 = vadd.f32 %v822, %v906
    %v908 = vpop.f32.mrb[0].mxu0
    %909 = vmatprep.mubr.f32.mxu0 0.0
    %910 = vmatmul.mubr.f32.gmra.mrb[0].mxu0 %v711
    %v911 = vpop.f32.mrb[0].mxu0
    %v912 = vadd.f32 %v827, %v911
    %v913 = vpop.f32.mrb[0].mxu0
    %914 = vmatprep.mubr.f32.mxu0 0.0
    %915 = vmatmul.mubr.f32.gmra.mrb[0].mxu0 %v712
    %v916 = vpop.f32.mrb[0].mxu0
    %v917 = vadd.f32 %v832, %v916
    %v918 = vpop.f32.mrb[0].mxu0
    %919 = vdwg.mxu0
    %v920 = vld [vmem:[#allocation3 + $0x4] sm:$0xff]
    %v921 = vld [vmem:[#allocation3 + $0xc] sm:$0xff]
    %v922 = vld [vmem:[#allocation3 + $0x1c] sm:$0xff]
    %v923 = vld [vmem:[#allocation3 + $0x24] sm:$0xff]
    %s924 = scalar_lea.vmem [#allocation9], 256
    %v925 = vld [vmem:[%s924] sm:$0xff]
    %v926 = vld [vmem:[%s924 + $0x8] sm:$0xff]
    %v927 = vld [vmem:[%s924 + $0x10] sm:$0xff]
    %v928 = vld [vmem:[%s924 + $0x18] sm:$0xff]
    %v929 = vld [vmem:[%s924 + $0x20] sm:$0xff]
    %v930 = vld [vmem:[%s924 + $0x28] sm:$0xff]
    %v931 = vld [vmem:[%s924 + $0x30] sm:$0xff]
    %v932 = vld [vmem:[%s924 + $0x38] sm:$0xff]
    %v933 = vld [vmem:[%s924 + $0x40] sm:$0xff]
    %v934 = vld [vmem:[%s924 + $0x48] sm:$0xff]
    %v935 = vld [vmem:[%s924 + $0x50] sm:$0xff]
    %v936 = vld [vmem:[%s924 + $0x58] sm:$0xff]
    %v937 = vld [vmem:[%s924 + $0x60] sm:$0xff]
    %v938 = vld [vmem:[%s924 + $0x68] sm:$0xff]
    %v939 = vld [vmem:[%s924 + $0x70] sm:$0xff]
    %v940 = vld [vmem:[%s924 + $0x78] sm:$0xff]
    %941 = vmatprep.subr.mxu0 0.0
    %942 = vmatpush1.msra.mxu0 %v925
    %943 = vmatprep.subr.mxu0 0.0
    %944 = vmatpush1.msra.mxu0 %v926
    %945 = vmatprep.subr.mxu0 0.0
    %946 = vmatpush1.msra.mxu0 %v927
    %947 = vmatprep.subr.mxu0 0.0
    %948 = vmatpush1.msra.mxu0 %v928
    %949 = vmatprep.subr.mxu0 0.0
    %950 = vmatpush1.msra.mxu0 %v929
    %951 = vmatprep.subr.mxu0 0.0
    %952 = vmatpush1.msra.mxu0 %v930
    %953 = vmatprep.subr.mxu0 0.0
    %954 = vmatpush1.msra.mxu0 %v931
    %955 = vmatprep.subr.mxu0 0.0
    %956 = vmatpush1.msra.mxu0 %v932
    %957 = vmatprep.subr.mxu0 0.0
    %958 = vmatpush1.msra.mxu0 %v933
    %959 = vmatprep.subr.mxu0 0.0
    %960 = vmatpush1.msra.mxu0 %v934
    %961 = vmatprep.subr.mxu0 0.0
    %962 = vmatpush1.msra.mxu0 %v935
    %963 = vmatprep.subr.mxu0 0.0
    %964 = vmatpush1.msra.mxu0 %v936
    %965 = vmatprep.subr.mxu0 0.0
    %966 = vmatpush1.msra.mxu0 %v937
    %967 = vmatprep.subr.mxu0 0.0
    %968 = vmatpush1.msra.mxu0 %v938
    %969 = vmatprep.subr.mxu0 0.0
    %970 = vmatpush1.msra.mxu0 %v939
    %971 = vmatprep.subr.mxu0 0.0
    %972 = vmatpush1.msra.mxu0 %v940
    %973 = vmatprep.subr.mxu0 0.0
    %974 = vmatpush1.msra.mxu0 0.0
    %975 = vmatprep.subr.mxu0 0.0
    %976 = vmatpush1.msra.mxu0 0.0
    %977 = vmatprep.subr.mxu0 0.0
    %978 = vmatpush1.msra.mxu0 0.0
    %979 = vmatprep.subr.mxu0 0.0
    %980 = vmatpush1.msra.mxu0 0.0
    %981 = vmatprep.subr.mxu0 0.0
    %982 = vmatpush1.msra.mxu0 0.0
    %983 = vmatprep.subr.mxu0 0.0
    %984 = vmatpush1.msra.mxu0 0.0
    %985 = vmatprep.subr.mxu0 0.0
    %986 = vmatpush1.msra.mxu0 0.0
    %987 = vmatprep.subr.mxu0 0.0
    %988 = vmatpush1.msra.mxu0 0.0
    %989 = vmatprep.subr.mxu0 0.0
    %990 = vmatpush1.msra.mxu0 0.0
    %991 = vmatprep.subr.mxu0 0.0
    %992 = vmatpush1.msra.mxu0 0.0
    %993 = vmatprep.subr.mxu0 0.0
    %994 = vmatpush1.msra.mxu0 0.0
    %995 = vmatprep.subr.mxu0 0.0
    %996 = vmatpush1.msra.mxu0 0.0
    %997 = vmatprep.subr.mxu0 0.0
    %998 = vmatpush1.msra.mxu0 0.0
    %999 = vmatprep.subr.mxu0 0.0
    %1000 = vmatpush1.msra.mxu0 0.0
    %1001 = vmatprep.subr.mxu0 0.0
    %1002 = vmatpush1.msra.mxu0 0.0
    %1003 = vmatprep.subr.mxu0 0.0
    %1004 = vmatpush1.msra.mxu0 0.0
    %1005 = vmatprep.mubr.f32.mxu0 0.0
    %1006 = vmatmul.mubr.f32.gmra.mrb[0].mxu0 %v920
    %v1007 = vpop.f32.mrb[0].mxu0
    %v1008 = vadd.f32 0.0, %v1007
    %v1009 = vpop.f32.mrb[0].mxu0
    %1010 = vmatprep.mubr.f32.mxu0 0.0
    %1011 = vmatmul.mubr.f32.gmra.mrb[0].mxu0 %v921
    %v1012 = vpop.f32.mrb[0].mxu0
    %v1013 = vadd.f32 0.0, %v1012
    %v1014 = vpop.f32.mrb[0].mxu0
    %1015 = vmatprep.mubr.f32.mxu0 0.0
    %1016 = vmatmul.mubr.f32.gmra.mrb[0].mxu0 %v922
    %v1017 = vpop.f32.mrb[0].mxu0
    %v1018 = vadd.f32 0.0, %v1017
    %v1019 = vpop.f32.mrb[0].mxu0
    %1020 = vmatprep.mubr.f32.mxu0 0.0
    %1021 = vmatmul.mubr.f32.gmra.mrb[0].mxu0 %v923
    %v1022 = vpop.f32.mrb[0].mxu0
    %v1023 = vadd.f32 0.0, %v1022
    %v1024 = vpop.f32.mrb[0].mxu0
    %1025 = vdwg.mxu0
    %v1026 = vadd.f32 %v902, %v1008
    %v1027 = vadd.f32 %v907, %v1013
    %v1028 = vadd.f32 %v912, %v1018
    %v1029 = vadd.f32 %v917, %v1023
    %1030 = vmatprep.subr.mxu0 0.0
    %1031 = vmatpush1.msra.mxu0 %v91
    %1032 = vmatprep.subr.mxu0 0.0
    %1033 = vmatpush1.msra.mxu0 %v92
    %1034 = vmatprep.subr.mxu0 0.0
    %1035 = vmatpush1.msra.mxu0 %v93
    %1036 = vmatprep.subr.mxu0 0.0
    %1037 = vmatpush1.msra.mxu0 %v94
    %1038 = vmatprep.subr.mxu0 0.0
    %1039 = vmatpush1.msra.mxu0 %v95
    %1040 = vmatprep.subr.mxu0 0.0
    %1041 = vmatpush1.msra.mxu0 %v96
    %1042 = vmatprep.subr.mxu0 0.0
    %1043 = vmatpush1.msra.mxu0 %v97
    %1044 = vmatprep.subr.mxu0 0.0
    %1045 = vmatpush1.msra.mxu0 %v98
    %1046 = vmatprep.subr.mxu0 0.0
    %1047 = vmatpush1.msra.mxu0 %v99
    %1048 = vmatprep.subr.mxu0 0.0
    %1049 = vmatpush1.msra.mxu0 %v100
    %1050 = vmatprep.subr.mxu0 0.0
    %1051 = vmatpush1.msra.mxu0 %v101
    %1052 = vmatprep.subr.mxu0 0.0
    %1053 = vmatpush1.msra.mxu0 %v102
    %1054 = vmatprep.subr.mxu0 0.0
    %1055 = vmatpush1.msra.mxu0 %v103
    %1056 = vmatprep.subr.mxu0 0.0
    %1057 = vmatpush1.msra.mxu0 %v104
    %1058 = vmatprep.subr.mxu0 0.0
    %1059 = vmatpush1.msra.mxu0 %v105
    %1060 = vmatprep.subr.mxu0 0.0
    %1061 = vmatpush1.msra.mxu0 %v106
    %1062 = vmatprep.subr.mxu0 0.0
    %1063 = vmatpush1.msra.mxu0 0.0
    %1064 = vmatprep.subr.mxu0 0.0
    %1065 = vmatpush1.msra.mxu0 0.0
    %1066 = vmatprep.subr.mxu0 0.0
    %1067 = vmatpush1.msra.mxu0 0.0
    %1068 = vmatprep.subr.mxu0 0.0
    %1069 = vmatpush1.msra.mxu0 0.0
    %1070 = vmatprep.subr.mxu0 0.0
    %1071 = vmatpush1.msra.mxu0 0.0
    %1072 = vmatprep.subr.mxu0 0.0
    %1073 = vmatpush1.msra.mxu0 0.0
    %1074 = vmatprep.subr.mxu0 0.0
    %1075 = vmatpush1.msra.mxu0 0.0
    %1076 = vmatprep.subr.mxu0 0.0
    %1077 = vmatpush1.msra.mxu0 0.0
    %1078 = vmatprep.subr.mxu0 0.0
    %1079 = vmatpush1.msra.mxu0 0.0
    %1080 = vmatprep.subr.mxu0 0.0
    %1081 = vmatpush1.msra.mxu0 0.0
    %1082 = vmatprep.subr.mxu0 0.0
    %1083 = vmatpush1.msra.mxu0 0.0
    %1084 = vmatprep.subr.mxu0 0.0
    %1085 = vmatpush1.msra.mxu0 0.0
    %1086 = vmatprep.subr.mxu0 0.0
    %1087 = vmatpush1.msra.mxu0 0.0
    %1088 = vmatprep.subr.mxu0 0.0
    %1089 = vmatpush1.msra.mxu0 0.0
    %1090 = vmatprep.subr.mxu0 0.0
    %1091 = vmatpush1.msra.mxu0 0.0
    %1092 = vmatprep.subr.mxu0 0.0
    %1093 = vmatpush1.msra.mxu0 0.0
    %1094 = vmatprep.mubr.f32.mxu0 0.0
    %1095 = vmatmul.mubr.f32.gmra.mrb[0].mxu0 %v1026
    %v1096 = vpop.f32.mrb[0].mxu0
    %v1097 = vadd.f32 0.0, %v1096
    %v1098 = vpop.f32.mrb[0].mxu0
    %1099 = vmatprep.mubr.f32.mxu0 0.0
    %1100 = vmatmul.mubr.f32.gmra.mrb[0].mxu0 %v1027
    %v1101 = vpop.f32.mrb[0].mxu0
    %v1102 = vadd.f32 0.0, %v1101
    %v1103 = vpop.f32.mrb[0].mxu0
    %1104 = vmatprep.mubr.f32.mxu0 0.0
    %1105 = vmatmul.mubr.f32.gmra.mrb[0].mxu0 %v1028
    %v1106 = vpop.f32.mrb[0].mxu0
    %v1107 = vadd.f32 0.0, %v1106
    %v1108 = vpop.f32.mrb[0].mxu0
    %1109 = vmatprep.mubr.f32.mxu0 0.0
    %1110 = vmatmul.mubr.f32.gmra.mrb[0].mxu0 %v1029
    %v1111 = vpop.f32.mrb[0].mxu0
    %v1112 = vadd.f32 0.0, %v1111
    %v1113 = vpop.f32.mrb[0].mxu0
    %1114 = vdwg.mxu0
    %v1115 = vadd.f32 %v1097, %v1102
    %v1116 = vadd.f32 %v1115, %v1107
    %v1117 = vadd.f32 %v1116, %v1112
    %v1118 = vrot.slane %v1117, 4
    %v1119 = vadd.f32 %v1117, %v1118
    %v1120 = vrot.slane %v1119, 2
    %v1121 = vadd.f32 %v1119, %v1120
    %v1122 = vrot.slane %v1121, 1
    %v1123 = vadd.f32 %v1121, %v1122
    %v1124 = vsub.f32 %v1026, %v1123
    %v1125 = vsub.f32 %v1027, %v1123
    %v1126 = vsub.f32 %v1028, %v1123
    %v1127 = vsub.f32 %v1029, %v1123
    %v1128 = vmul.f32 %v1124, %v1124
    %v1129 = vmul.f32 %v1125, %v1125
    %v1130 = vmul.f32 %v1126, %v1126
    %v1131 = vmul.f32 %v1127, %v1127
    %1132 = vmatprep.subr.mxu0 0.0
    %1133 = vmatpush1.msra.mxu0 %v91
    %1134 = vmatprep.subr.mxu0 0.0
    %1135 = vmatpush1.msra.mxu0 %v92
    %1136 = vmatprep.subr.mxu0 0.0
    %1137 = vmatpush1.msra.mxu0 %v93
    %1138 = vmatprep.subr.mxu0 0.0
    %1139 = vmatpush1.msra.mxu0 %v94
    %1140 = vmatprep.subr.mxu0 0.0
    %1141 = vmatpush1.msra.mxu0 %v95
    %1142 = vmatprep.subr.mxu0 0.0
    %1143 = vmatpush1.msra.mxu0 %v96
    %1144 = vmatprep.subr.mxu0 0.0
    %1145 = vmatpush1.msra.mxu0 %v97
    %1146 = vmatprep.subr.mxu0 0.0
    %1147 = vmatpush1.msra.mxu0 %v98
    %1148 = vmatprep.subr.mxu0 0.0
    %1149 = vmatpush1.msra.mxu0 %v99
    %1150 = vmatprep.subr.mxu0 0.0
    %1151 = vmatpush1.msra.mxu0 %v100
    %1152 = vmatprep.subr.mxu0 0.0
    %1153 = vmatpush1.msra.mxu0 %v101
    %1154 = vmatprep.subr.mxu0 0.0
    %1155 = vmatpush1.msra.mxu0 %v102
    %1156 = vmatprep.subr.mxu0 0.0
    %1157 = vmatpush1.msra.mxu0 %v103
    %1158 = vmatprep.subr.mxu0 0.0
    %1159 = vmatpush1.msra.mxu0 %v104
    %1160 = vmatprep.subr.mxu0 0.0
    %1161 = vmatpush1.msra.mxu0 %v105
    %1162 = vmatprep.subr.mxu0 0.0
    %1163 = vmatpush1.msra.mxu0 %v106
    %1164 = vmatprep.subr.mxu0 0.0
    %1165 = vmatpush1.msra.mxu0 0.0
    %1166 = vmatprep.subr.mxu0 0.0
    %1167 = vmatpush1.msra.mxu0 0.0
    %1168 = vmatprep.subr.mxu0 0.0
    %1169 = vmatpush1.msra.mxu0 0.0
    %1170 = vmatprep.subr.mxu0 0.0
    %1171 = vmatpush1.msra.mxu0 0.0
    %1172 = vmatprep.subr.mxu0 0.0
    %1173 = vmatpush1.msra.mxu0 0.0
    %1174 = vmatprep.subr.mxu0 0.0
    %1175 = vmatpush1.msra.mxu0 0.0
    %1176 = vmatprep.subr.mxu0 0.0
    %1177 = vmatpush1.msra.mxu0 0.0
    %1178 = vmatprep.subr.mxu0 0.0
    %1179 = vmatpush1.msra.mxu0 0.0
    %1180 = vmatprep.subr.mxu0 0.0
    %1181 = vmatpush1.msra.mxu0 0.0
    %1182 = vmatprep.subr.mxu0 0.0
    %1183 = vmatpush1.msra.mxu0 0.0
    %1184 = vmatprep.subr.mxu0 0.0
    %1185 = vmatpush1.msra.mxu0 0.0
    %1186 = vmatprep.subr.mxu0 0.0
    %1187 = vmatpush1.msra.mxu0 0.0
    %1188 = vmatprep.subr.mxu0 0.0
    %1189 = vmatpush1.msra.mxu0 0.0
    %1190 = vmatprep.subr.mxu0 0.0
    %1191 = vmatpush1.msra.mxu0 0.0
    %1192 = vmatprep.subr.mxu0 0.0
    %1193 = vmatpush1.msra.mxu0 0.0
    %1194 = vmatprep.subr.mxu0 0.0
    %1195 = vmatpush1.msra.mxu0 0.0
    %1196 = vmatprep.mubr.f32.mxu0 0.0
    %1197 = vmatmul.mubr.f32.gmra.mrb[0].mxu0 %v1128
    %v1198 = vpop.f32.mrb[0].mxu0
    %v1199 = vadd.f32 0.0, %v1198
    %v1200 = vpop.f32.mrb[0].mxu0
    %1201 = vmatprep.mubr.f32.mxu0 0.0
    %1202 = vmatmul.mubr.f32.gmra.mrb[0].mxu0 %v1129
    %v1203 = vpop.f32.mrb[0].mxu0
    %v1204 = vadd.f32 0.0, %v1203
    %v1205 = vpop.f32.mrb[0].mxu0
    %1206 = vmatprep.mubr.f32.mxu0 0.0
    %1207 = vmatmul.mubr.f32.gmra.mrb[0].mxu0 %v1130
    %v1208 = vpop.f32.mrb[0].mxu0
    %v1209 = vadd.f32 0.0, %v1208
    %v1210 = vpop.f32.mrb[0].mxu0
    %1211 = vmatprep.mubr.f32.mxu0 0.0
    %1212 = vmatmul.mubr.f32.gmra.mrb[0].mxu0 %v1131
    %v1213 = vpop.f32.mrb[0].mxu0
    %v1214 = vadd.f32 0.0, %v1213
    %v1215 = vpop.f32.mrb[0].mxu0
    %1216 = vdwg.mxu0
    %v1217 = vadd.f32 %v1199, %v1204
    %v1218 = vadd.f32 %v1217, %v1209
    %v1219 = vadd.f32 %v1218, %v1214
    %v1220 = vrot.slane %v1219, 4
    %v1221 = vadd.f32 %v1219, %v1220
    %v1222 = vrot.slane %v1221, 2
    %v1223 = vadd.f32 %v1221, %v1222
    %v1224 = vrot.slane %v1223, 1
    %v1225 = vadd.f32 %v1223, %v1224
    %v1226 = vadd.f32 %v1225, 1e-05
    %v1227 = vrsqrt.pop %v1226
    %v1228 = vmul.f32 %v706, %v1227
    %v1230 = vlaneseq
    %v1231 = vshrl.u32 %v1230, 7
    %v1232 = vsub.s32 0, %v1231
    %v1233 = vrot.slane %v1228, %v1232
    %v1235 = vmul.f32 %v1124, %v1233
    %v1236 = vmul.f32 %v1125, %v1233
    %v1237 = vmul.f32 %v1126, %v1233
    %v1238 = vmul.f32 %v1127, %v1233
    %v1240 = vlaneseq
    %v1241 = vshrl.u32 %v1240, 7
    %v1242 = vsub.s32 0, %v1241
    %v1243 = vrot.slane %v707, %v1242
    %v1245 = vadd.f32 %v1235, %v1243
    %v1246 = vadd.f32 %v1236, %v1243
    %v1247 = vadd.f32 %v1237, %v1243
    %v1248 = vadd.f32 %v1238, %v1243
    %vm1249 = vcmp.gt.f32.partialorder %v1245, 0.0
    %vm1250 = vcmp.gt.f32.partialorder %v1246, 0.0
    %vm1251 = vcmp.gt.f32.partialorder %v1247, 0.0
    %vm1252 = vcmp.gt.f32.partialorder %v1248, 0.0
    %v1254 = vlaneseq
    %v1255 = vshrl.u32 %v1254, 7
    %v1256 = vsub.s32 0, %v1255
    %v1257 = vrot.slane %v708, %v1256
    %v1259 = vmul.f32 %v1257, %v1245
    %v1260 = vmul.f32 %v1257, %v1246
    %v1261 = vmul.f32 %v1257, %v1247
    %v1262 = vmul.f32 %v1257, %v1248
    %v1263 = vsel %vm1249, %v1245, %v1259
    %v1264 = vsel %vm1250, %v1246, %v1260
    %v1265 = vsel %vm1251, %v1247, %v1261
    %v1266 = vsel %vm1252, %v1248, %v1262
    %1267 = vst [vmem:[#allocation12] sm:$0xff] %v1263
    %1268 = vst [vmem:[#allocation12 + $0x8] sm:$0xff] %v1264
    %1269 = vst [vmem:[#allocation12 + $0x10] sm:$0xff] %v1265
    %1270 = vst [vmem:[#allocation12 + $0x18] sm:$0xff] %v1266
    // Predicated region
    $region58: #{tpu_custom_call.1} parent=1 // pred_check
      _
    $region59: #{tpu_custom_call.1} parent=1 // pred_check_branch
      %1272 = sbr.rel (0) target = $region61
    $region60: #{tpu_custom_call.1} parent=1 // pred_region
      %s1274 = ssub.s32 512, 512
      %1275 = vsyncadd [#allocation6], %s1274
      %s1276 = sshll.u32 [#allocation12], 4
      %s1277 = int_to_ptr.vmem [resolvable:$true] %s1276
      %1282 = dma.vmem_to_hbm [thread:$0]  %s1277, 512, %s10, [#allocation6], 128, 128, 8
    $region61: #{tpu_custom_call.1} parent=1 // pred_fallthru
      _
    // Predicated region
    $region62: #{tpu_custom_call.1} parent=1 // pred_check
      _
    $region63: #{tpu_custom_call.1} parent=1 // pred_check_branch
      %1284 = sbr.rel (0) target = $region65
    $region64: #{tpu_custom_call.1} parent=1 // pred_region
      %1285 = dma.done [#allocation6], 512
    $region65: #{tpu_custom_call.1} parent=1 // pred_fallthru
      _
    %1286 = vsyncpa [#allocation5], 1
    %1287 = vsyncpa [#allocation8], 1
    %1288 = vsyncpa [#allocation11], 1
    %1289 = vsyncpa [#allocation6], 1

</llo_original>
